<compile_context>
chip_gen: v6e
topology: v6e:2x2x1
jax: 0.10.0
libtpu: 0.0.40
codegen_flags: <defaults>
</compile_context>

<pallas_src>
import jax
import jax.numpy as jnp
import numpy as np
from jax.experimental import pallas as pl
from jax.experimental.pallas import tpu as pltpu

LANE = 128


# ---------------------------------------------------------------------------
# Kernel 1: fused key/query + value projections (1x1 convs as matmuls).
# ---------------------------------------------------------------------------
def _proj_kernel(x_ref, wk_ref, bk_ref, wv_ref, bv_ref, kq_ref, v_ref):
    x = x_ref[0]  # (TM, Cinp) bf16
    # f_key == f_query (shared): 1x1 conv + folded BN + ReLU (+ folded softmax scale)
    kq = jnp.dot(x, wk_ref[...], preferred_element_type=jnp.float32) + bk_ref[...]
    kq_ref[0] = jnp.maximum(kq, 0.0).astype(kq_ref.dtype)
    # f_value: 1x1 conv
    v = jnp.dot(x, wv_ref[...], preferred_element_type=jnp.float32) + bv_ref[...]
    v_ref[0] = v.astype(v_ref.dtype)


# ---------------------------------------------------------------------------
# Kernel 2: flash-style self-attention (query == key) + fused output proj.
# Grid: (B, N/TQ, N/TK); the KV axis is the reduction ("arbitrary") axis.
# ---------------------------------------------------------------------------
def _attn_kernel(q_ref, k_ref, v_ref, wf_ref, bf_ref, o_ref, m_sc, l_sc, acc_sc):
    kv = pl.program_id(2)

    @pl.when(kv == 0)
    def _():
        m_sc[...] = jnp.full_like(m_sc, -jnp.inf)
        l_sc[...] = jnp.zeros_like(l_sc)
        acc_sc[...] = jnp.zeros_like(acc_sc)

    q = q_ref[0]   # (TQ, Kcp) bf16 — softmax scale already folded into projection
    k = k_ref[0]   # (TK, Kcp) bf16
    # Contract the last axes directly: no explicit kq.T / XLU transpose.
    s = jax.lax.dot_general(q, k, (((1,), (1,)), ((), ())),
                            preferred_element_type=jnp.float32)  # (TQ, TK) f32

    m_prev = m_sc[...]
    m_new = jnp.maximum(m_prev, jnp.max(s, axis=-1, keepdims=True))
    alpha = jnp.exp(m_prev - m_new)
    p = jnp.exp(s - m_new)
    l_sc[...] = alpha * l_sc[...] + jnp.sum(p, axis=-1, keepdims=True)
    acc_sc[...] = alpha * acc_sc[...] + jnp.dot(
        p.astype(v_ref.dtype), v_ref[0], preferred_element_type=jnp.float32)
    m_sc[...] = m_new

    @pl.when(kv == pl.num_programs(2) - 1)
    def _():
        # softmax normalization via EUP reciprocal (approx), then the single
        # fused output projection: (W conv) o (conv_bn) folded into one matmul.
        ctx = acc_sc[...] * pl.reciprocal(l_sc[...], approx=True)
        out = jnp.dot(ctx.astype(wf_ref.dtype), wf_ref[...],
                      preferred_element_type=jnp.float32) + bf_ref[...]
        o_ref[0] = jnp.maximum(out, 0.0).astype(o_ref.dtype)


# ---------------------------------------------------------------------------
# Parameter construction / folding (plain-JAX glue, outside the kernels).
# ---------------------------------------------------------------------------
def _fold_bn(w, b, gamma, beta, mean, var, eps=1e-5):
    """Fold inference BatchNorm into a preceding 1x1 conv given as (Cin, Cout)."""
    scale = gamma / jnp.sqrt(var + eps)
    return w * scale[None, :], (b - mean) * scale + beta


def make_params(key, in_channels, out_channels, key_channels, value_channels):
    ks = jax.random.split(key, 12)
    f32 = jnp.float32
    p = {}
    # f_key conv (shared with f_query): (Cin, Kc) matrix view of (Kc, Cin, 1, 1)
    p['wk'] = 0.1 * jax.random.normal(ks[0], (in_channels, key_channels), f32)
    p['bk'] = 0.1 * jax.random.normal(ks[1], (key_channels,), f32)
    p['bn_k_gamma'] = 1.0 + 0.1 * jax.random.normal(ks[2], (key_channels,), f32)
    p['bn_k_beta'] = 0.1 * jax.random.normal(ks[3], (key_channels,), f32)
    p['bn_k_mean'] = 0.1 * jax.random.normal(ks[4], (key_channels,), f32)
    p['bn_k_var'] = jax.random.uniform(ks[5], (key_channels,), f32, 0.5, 1.5)
    # f_value conv
    p['wv'] = 0.1 * jax.random.normal(ks[6], (in_channels, value_channels), f32)
    p['bv'] = 0.1 * jax.random.normal(ks[7], (value_channels,), f32)
    # W conv (value_channels -> out_channels); nonzero deterministic init here
    p['ww'] = 0.1 * jax.random.normal(ks[8], (value_channels, out_channels), f32)
    p['bw'] = 0.1 * jax.random.normal(ks[9], (out_channels,), f32)
    # conv_bn_dropout: conv (in_channels -> out_channels) + BN  (in == out here)
    p['wf'] = 0.1 * jax.random.normal(ks[10], (out_channels, out_channels), f32)
    p['bf'] = 0.1 * jax.random.normal(ks[11], (out_channels,), f32)
    p['bn_f_gamma'] = jnp.ones((out_channels,), f32) * 1.05
    p['bn_f_beta'] = jnp.ones((out_channels,), f32) * 0.02
    p['bn_f_mean'] = jnp.zeros((out_channels,), f32)
    p['bn_f_var'] = jnp.ones((out_channels,), f32)
    return p


def _folded_params(p):
    # f_key/f_query: conv + folded BN; also fold the softmax scale kc**-0.5 as
    # kc**-0.25 into the shared key/query projection (ReLU is pos. homogeneous).
    wk, bk = _fold_bn(p['wk'], p['bk'], p['bn_k_gamma'], p['bn_k_beta'],
                      p['bn_k_mean'], p['bn_k_var'])
    s = jnp.float32(wk.shape[1] ** -0.25)
    wk, bk = wk * s, bk * s
    # conv_bn_dropout's conv + folded BN, then fuse with the attention W conv
    # (no nonlinearity between them).
    wf, bf = _fold_bn(p['wf'], p['bf'], p['bn_f_gamma'], p['bn_f_beta'],
                      p['bn_f_mean'], p['bn_f_var'])
    w_fused = p['ww'] @ wf
    b_fused = p['bw'] @ wf + bf
    return wk, bk, p['wv'], p['bv'], w_fused, b_fused


def _pad_axis(a, axis, mult):
    pad = (-a.shape[axis]) % mult
    if pad == 0:
        return a
    widths = [(0, 0)] * a.ndim
    widths[axis] = (0, pad)
    return jnp.pad(a, widths)


def _pick_tile(n, preferred=128):
    if n % preferred == 0:
        return preferred
    for t in (64, 32, 16, 8):
        if n % t == 0:
            return t
    return n


# ---------------------------------------------------------------------------
# Forward wrapper.
# ---------------------------------------------------------------------------
@jax.jit
def baseoc_context_forward(x_nchw, p):
    B, Cin, H, W = x_nchw.shape
    N = H * W

    wk, bk, wv, bv, w_fused, b_fused = _folded_params(p)
    Cout = w_fused.shape[1]

    # Lane-dense padding of every channel dim to a multiple of 128; zero pads
    # are exact (ReLU(0)=0, zero weight rows/cols contribute nothing).
    wk_p = _pad_axis(_pad_axis(wk, 0, LANE), 1, LANE).astype(jnp.bfloat16)
    wv_p = _pad_axis(_pad_axis(wv, 0, LANE), 1, LANE).astype(jnp.bfloat16)
    wf_p = _pad_axis(_pad_axis(w_fused, 0, LANE), 1, LANE).astype(jnp.bfloat16)
    bk_p = _pad_axis(bk.reshape(1, -1), 1, LANE)
    bv_p = _pad_axis(bv.reshape(1, -1), 1, LANE)
    bf_p = _pad_axis(b_fused.reshape(1, -1), 1, LANE)
    Cinp, Kcp = wk_p.shape
    Vcp, Coutp = wf_p.shape

    # NCHW -> (B, N, Cin) tokens, pad channels, bf16 MXU operands (f32 accum).
    # TODO(synk): accept/produce NHWC to drop these HBM round-trip transposes.
    x = jnp.transpose(x_nchw, (0, 2, 3, 1)).reshape(B, N, Cin).astype(jnp.float32)
    x = _pad_axis(x, 2, LANE).astype(jnp.bfloat16)

    TM = _pick_tile(N)   # token tile for projections / queries
    TK = _pick_tile(N)   # KV tile (fits comfortably in v7x's 64 MiB VMEM too)

    # ---- projections: kq = ReLU(x Wk + bk) (scale folded), v = x Wv + bv ----
    kq, v = pl.pallas_call(
        _proj_kernel,
        out_shape=(jax.ShapeDtypeStruct((B, N, Kcp), jnp.bfloat16),
                   jax.ShapeDtypeStruct((B, N, Vcp), jnp.bfloat16)),
        grid=(B, N // TM),
        in_specs=[
            pl.BlockSpec((1, TM, Cinp), lambda b, i: (b, i, 0)),
            pl.BlockSpec((Cinp, Kcp), lambda b, i: (0, 0)),
            pl.BlockSpec((1, Kcp), lambda b, i: (0, 0)),
            pl.BlockSpec((Cinp, Vcp), lambda b, i: (0, 0)),
            pl.BlockSpec((1, Vcp), lambda b, i: (0, 0)),
        ],
        out_specs=[
            pl.BlockSpec((1, TM, Kcp), lambda b, i: (b, i, 0)),
            pl.BlockSpec((1, TM, Vcp), lambda b, i: (b, i, 0)),
        ],
        compiler_params=pltpu.CompilerParams(
            dimension_semantics=("parallel", "parallel")),
    )(x, wk_p, bk_p, wv_p, bv_p)

    # ---- flash attention + fused (W conv o conv_bn) output projection ------
    out_p = pl.pallas_call(
        _attn_kernel,
        out_shape=jax.ShapeDtypeStruct((B, N, Coutp), jnp.float32),
        grid=(B, N // TM, N // TK),
        in_specs=[
            pl.BlockSpec((1, TM, Kcp), lambda b, qi, ki: (b, qi, 0)),  # queries
            pl.BlockSpec((1, TK, Kcp), lambda b, qi, ki: (b, ki, 0)),  # keys
            pl.BlockSpec((1, TK, Vcp), lambda b, qi, ki: (b, ki, 0)),  # values
            pl.BlockSpec((Vcp, Coutp), lambda b, qi, ki: (0, 0)),
            pl.BlockSpec((1, Coutp), lambda b, qi, ki: (0, 0)),
        ],
        out_specs=pl.BlockSpec((1, TM, Coutp), lambda b, qi, ki: (b, qi, 0)),
        scratch_shapes=[
            pltpu.VMEM((TM, 1), jnp.float32),    # running max m
            pltpu.VMEM((TM, 1), jnp.float32),    # running denom l
            pltpu.VMEM((TM, Vcp), jnp.float32),  # running context acc
        ],
        compiler_params=pltpu.CompilerParams(
            dimension_semantics=("parallel", "parallel", "arbitrary")),
    )(kq, kq, v, wf_p, bf_p)

    # strip channel padding, (B, N, Cout) -> NCHW
    out = out_p[:, :, :Cout]
    return jnp.transpose(out.reshape(B, H, W, Cout), (0, 3, 1, 2))


# ---------------------------------------------------------------------------
# Pure-JAX f32 reference with the *unfused* math (checks fusions too).
# ---------------------------------------------------------------------------
def reference_forward(x_nchw, p):
    B, Cin, H, W = x_nchw.shape
    N = H * W
    wk, bk = _fold_bn(p['wk'], p['bk'], p['bn_k_gamma'], p['bn_k_beta'],
                      p['bn_k_mean'], p['bn_k_var'])
    wf, bf = _fold_bn(p['wf'], p['bf'], p['bn_f_gamma'], p['bn_f_beta'],
                      p['bn_f_mean'], p['bn_f_var'])
    x = jnp.transpose(x_nchw, (0, 2, 3, 1)).reshape(B, N, Cin).astype(jnp.float32)
    kq = jnp.maximum(x @ wk + bk, 0.0)
    v = x @ p['wv'] + p['bv']
    sim = jnp.einsum('bnk,bmk->bnm', kq, kq) * (wk.shape[1] ** -0.5)
    sim = jax.nn.softmax(sim, axis=-1)
    ctx = jnp.einsum('bnm,bmv->bnv', sim, v)
    attn = ctx @ p['ww'] + p['bw']
    out = jnp.maximum(attn @ wf + bf, 0.0)
    return jnp.transpose(out.reshape(B, H, W, wf.shape[1]), (0, 3, 1, 2))


if __name__ == "__main__":
    key = jax.random.PRNGKey(0)
    k_x, k_p = jax.random.split(key)

    B, C, H, W = 2, 32, 16, 16         # in_channels == out_channels (module requires it)
    key_channels, value_channels = 16, 16

    x = jax.random.normal(k_x, (B, C, H, W), jnp.float32)
    params = make_params(k_p, C, C, key_channels, value_channels)

    y = jax.block_until_ready(baseoc_context_forward(x, params))
    y_ref = reference_forward(x, params)

    # bf16 MXU operands + approx reciprocal => tolerance loosened vs pure-f32.
    np.testing.assert_allclose(np.asarray(y), np.asarray(y_ref), rtol=5e-2, atol=5e-2)
    assert y.shape == (B, C, H, W)

    print("KERNEL_OK")
</pallas_src>

<mosaic_0001>
module attributes {stable_mosaic.version = 11 : i64} {
  func.func @_proj_kernel(%arg0: i32, %arg1: i32, %arg2: memref<1x128x128xbf16, #tpu.memory_space<vmem>>, %arg3: memref<128x128xbf16, #tpu.memory_space<vmem>>, %arg4: memref<1x128xf32, #tpu.memory_space<vmem>>, %arg5: memref<128x128xbf16, #tpu.memory_space<vmem>>, %arg6: memref<1x128xf32, #tpu.memory_space<vmem>>, %arg7: memref<1x128x128xbf16, #tpu.memory_space<vmem>>, %arg8: memref<1x128x128xbf16, #tpu.memory_space<vmem>>) attributes {dimension_semantics = [#tpu.dimension_semantics<parallel>, #tpu.dimension_semantics<parallel>], iteration_bounds = array<i64: 2, 2>, scalar_prefetch = 0 : i64, scratch_operands = 0 : i64, tpu.core_type = #tpu.core_type<tc>, window_params = [{transform_indices = @transform_0, window_bounds = array<i64: 1, 128, 128>}, {pipeline_mode = #tpu.pipeline_mode<synchronous>, transform_indices = @transform_1, window_bounds = array<i64: 128, 128>}, {pipeline_mode = #tpu.pipeline_mode<synchronous>, transform_indices = @transform_2, window_bounds = array<i64: 1, 128>}, {pipeline_mode = #tpu.pipeline_mode<synchronous>, transform_indices = @transform_3, window_bounds = array<i64: 128, 128>}, {pipeline_mode = #tpu.pipeline_mode<synchronous>, transform_indices = @transform_4, window_bounds = array<i64: 1, 128>}, {transform_indices = @transform_5, window_bounds = array<i64: 1, 128, 128>}, {transform_indices = @transform_6, window_bounds = array<i64: 1, 128, 128>}]} {
    %c0 = arith.constant 0 : index
    %c0_0 = arith.constant 0 : index
    %c0_1 = arith.constant 0 : index
    %0 = vector.load %arg2[%c0, %c0_0, %c0_1] : memref<1x128x128xbf16, #tpu.memory_space<vmem>>, vector<1x128x128xbf16>
    %1 = vector.shape_cast %0 : vector<1x128x128xbf16> to vector<128x128xbf16>
    %c0_2 = arith.constant 0 : index
    %c0_3 = arith.constant 0 : index
    %2 = vector.load %arg3[%c0_2, %c0_3] : memref<128x128xbf16, #tpu.memory_space<vmem>>, vector<128x128xbf16>
    %cst = arith.constant dense<0.000000e+00> : vector<128x128xf32>
    %3 = tpu.matmul %1, %2, %cst {dimension_numbers = #tpu.dot_dimension_numbers<[1], [0], [0], [1], [0, 0, 1, 1], [], []>} : vector<128x128xbf16>, vector<128x128xbf16>, vector<128x128xf32> -> vector<128x128xf32>
    %c0_4 = arith.constant 0 : index
    %c0_5 = arith.constant 0 : index
    %4 = vector.load %arg4[%c0_4, %c0_5] : memref<1x128xf32, #tpu.memory_space<vmem>>, vector<1x128xf32>
    %5 = vector.broadcast %4 : vector<1x128xf32> to vector<128x128xf32>
    %6 = arith.addf %3, %5 : vector<128x128xf32>
    %cst_6 = arith.constant 0.000000e+00 : f32
    %7 = vector.broadcast %cst_6 : f32 to vector<128x128xf32>
    %8 = arith.maximumf %6, %7 : vector<128x128xf32>
    %9 = arith.truncf %8 : vector<128x128xf32> to vector<128x128xbf16>
    %c0_7 = arith.constant 0 : index
    %c0_8 = arith.constant 0 : index
    %c0_9 = arith.constant 0 : index
    %10 = vector.load %arg7[%c0_7, %c0_8, %c0_9] : memref<1x128x128xbf16, #tpu.memory_space<vmem>>, vector<1x128x128xbf16>
    %11 = vector.shape_cast %10 : vector<1x128x128xbf16> to vector<128x128xbf16>
    %12 = vector.shape_cast %9 : vector<128x128xbf16> to vector<1x128x128xbf16>
    tpu.vector_store %arg7[%c0_7, %c0_8, %c0_9], %12 {strides = array<i32>} : memref<1x128x128xbf16, #tpu.memory_space<vmem>>, vector<1x128x128xbf16>,
    %c0_10 = arith.constant 0 : index
    %c0_11 = arith.constant 0 : index
    %13 = vector.load %arg5[%c0_10, %c0_11] : memref<128x128xbf16, #tpu.memory_space<vmem>>, vector<128x128xbf16>
    %cst_12 = arith.constant dense<0.000000e+00> : vector<128x128xf32>
    %14 = tpu.matmul %1, %13, %cst_12 {dimension_numbers = #tpu.dot_dimension_numbers<[1], [0], [0], [1], [0, 0, 1, 1], [], []>} : vector<128x128xbf16>, vector<128x128xbf16>, vector<128x128xf32> -> vector<128x128xf32>
    %c0_13 = arith.constant 0 : index
    %c0_14 = arith.constant 0 : index
    %15 = vector.load %arg6[%c0_13, %c0_14] : memref<1x128xf32, #tpu.memory_space<vmem>>, vector<1x128xf32>
    %16 = vector.broadcast %15 : vector<1x128xf32> to vector<128x128xf32>
    %17 = arith.addf %14, %16 : vector<128x128xf32>
    %18 = arith.truncf %17 : vector<128x128xf32> to vector<128x128xbf16>
    %c0_15 = arith.constant 0 : index
    %c0_16 = arith.constant 0 : index
    %c0_17 = arith.constant 0 : index
    %19 = vector.load %arg8[%c0_15, %c0_16, %c0_17] : memref<1x128x128xbf16, #tpu.memory_space<vmem>>, vector<1x128x128xbf16>
    %20 = vector.shape_cast %19 : vector<1x128x128xbf16> to vector<128x128xbf16>
    %21 = vector.shape_cast %18 : vector<128x128xbf16> to vector<1x128x128xbf16>
    tpu.vector_store %arg8[%c0_15, %c0_16, %c0_17], %21 {strides = array<i32>} : memref<1x128x128xbf16, #tpu.memory_space<vmem>>, vector<1x128x128xbf16>,
    return
  }
  func.func @transform_0(%arg0: i32, %arg1: i32) -> (i32, i32, i32) {
    %c0_i32 = arith.constant 0 : i32
    %c0_i32_0 = arith.constant 0 : i32
    return %arg0, %arg1, %c0_i32 : i32, i32, i32
  }
  func.func @transform_1(%arg0: i32, %arg1: i32) -> (i32, i32) {
    %c0_i32 = arith.constant 0 : i32
    %c0_i32_0 = arith.constant 0 : i32
    %c0_i32_1 = arith.constant 0 : i32
    return %c0_i32, %c0_i32_0 : i32, i32
  }
  func.func @transform_2(%arg0: i32, %arg1: i32) -> (i32, i32) {
    %c0_i32 = arith.constant 0 : i32
    %c0_i32_0 = arith.constant 0 : i32
    %c0_i32_1 = arith.constant 0 : i32
    return %c0_i32, %c0_i32_0 : i32, i32
  }
  func.func @transform_3(%arg0: i32, %arg1: i32) -> (i32, i32) {
    %c0_i32 = arith.constant 0 : i32
    %c0_i32_0 = arith.constant 0 : i32
    %c0_i32_1 = arith.constant 0 : i32
    return %c0_i32, %c0_i32_0 : i32, i32
  }
  func.func @transform_4(%arg0: i32, %arg1: i32) -> (i32, i32) {
    %c0_i32 = arith.constant 0 : i32
    %c0_i32_0 = arith.constant 0 : i32
    %c0_i32_1 = arith.constant 0 : i32
    return %c0_i32, %c0_i32_0 : i32, i32
  }
  func.func @transform_5(%arg0: i32, %arg1: i32) -> (i32, i32, i32) {
    %c0_i32 = arith.constant 0 : i32
    %c0_i32_0 = arith.constant 0 : i32
    return %arg0, %arg1, %c0_i32 : i32, i32, i32
  }
  func.func @transform_6(%arg0: i32, %arg1: i32) -> (i32, i32, i32) {
    %c0_i32 = arith.constant 0 : i32
    %c0_i32_0 = arith.constant 0 : i32
    return %arg0, %arg1, %c0_i32 : i32, i32, i32
  }
}

module attributes {stable_mosaic.version = 11 : i64} {
  func.func @_attn_kernel(%arg0: i32, %arg1: i32, %arg2: i32, %arg3: memref<1x128x128xbf16, #tpu.memory_space<vmem>>, %arg4: memref<1x128x128xbf16, #tpu.memory_space<vmem>>, %arg5: memref<1x128x128xbf16, #tpu.memory_space<vmem>>, %arg6: memref<128x128xbf16, #tpu.memory_space<vmem>>, %arg7: memref<1x128xf32, #tpu.memory_space<vmem>>, %arg8: memref<1x128x128xf32, #tpu.memory_space<vmem>>, %arg9: memref<128x1xf32, #tpu.memory_space<vmem>>, %arg10: memref<128x1xf32, #tpu.memory_space<vmem>>, %arg11: memref<128x128xf32, #tpu.memory_space<vmem>>) attributes {dimension_semantics = [#tpu.dimension_semantics<parallel>, #tpu.dimension_semantics<parallel>, #tpu.dimension_semantics<arbitrary>], iteration_bounds = array<i64: 2, 2, 2>, scalar_prefetch = 0 : i64, scratch_operands = 3 : i64, tpu.core_type = #tpu.core_type<tc>, window_params = [{transform_indices = @transform_0, window_bounds = array<i64: 1, 128, 128>}, {transform_indices = @transform_1, window_bounds = array<i64: 1, 128, 128>}, {transform_indices = @transform_2, window_bounds = array<i64: 1, 128, 128>}, {pipeline_mode = #tpu.pipeline_mode<synchronous>, transform_indices = @transform_3, window_bounds = array<i64: 128, 128>}, {pipeline_mode = #tpu.pipeline_mode<synchronous>, transform_indices = @transform_4, window_bounds = array<i64: 1, 128>}, {transform_indices = @transform_5, window_bounds = array<i64: 1, 128, 128>}]} {
    %c0_i32 = arith.constant 0 : i32
    %0 = arith.cmpi eq, %arg2, %c0_i32 : i32
    %1 = arith.extui %0 : i1 to i32
    %c0_i32_0 = arith.constant 0 : i32
    %2 = arith.cmpi ne, %1, %c0_i32_0 : i32
    scf.if %2 {
      %cst_25 = arith.constant 0xFF800000 : f32
      %36 = vector.broadcast %cst_25 : f32 to vector<128x1xf32>
      %c0_26 = arith.constant 0 : index
      %c0_27 = arith.constant 0 : index
      %37 = vector.load %arg9[%c0_26, %c0_27] : memref<128x1xf32, #tpu.memory_space<vmem>>, vector<128x1xf32>
      tpu.vector_store %arg9[%c0_26, %c0_27], %36 {strides = array<i32>} : memref<128x1xf32, #tpu.memory_space<vmem>>, vector<128x1xf32>,
      %cst_28 = arith.constant 0.000000e+00 : f32
      %38 = vector.broadcast %cst_28 : f32 to vector<128x1xf32>
      %c0_29 = arith.constant 0 : index
      %c0_30 = arith.constant 0 : index
      %39 = vector.load %arg10[%c0_29, %c0_30] : memref<128x1xf32, #tpu.memory_space<vmem>>, vector<128x1xf32>
      tpu.vector_store %arg10[%c0_29, %c0_30], %38 {strides = array<i32>} : memref<128x1xf32, #tpu.memory_space<vmem>>, vector<128x1xf32>,
      %cst_31 = arith.constant 0.000000e+00 : f32
      %40 = vector.broadcast %cst_31 : f32 to vector<128x128xf32>
      %c0_32 = arith.constant 0 : index
      %c0_33 = arith.constant 0 : index
      %41 = vector.load %arg11[%c0_32, %c0_33] : memref<128x128xf32, #tpu.memory_space<vmem>>, vector<128x128xf32>
      tpu.vector_store %arg11[%c0_32, %c0_33], %40 {strides = array<i32>} : memref<128x128xf32, #tpu.memory_space<vmem>>, vector<128x128xf32>,
    } else {
    }
    %c0 = arith.constant 0 : index
    %c0_1 = arith.constant 0 : index
    %c0_2 = arith.constant 0 : index
    %3 = vector.load %arg3[%c0, %c0_1, %c0_2] : memref<1x128x128xbf16, #tpu.memory_space<vmem>>, vector<1x128x128xbf16>
    %4 = vector.shape_cast %3 : vector<1x128x128xbf16> to vector<128x128xbf16>
    %c0_3 = arith.constant 0 : index
    %c0_4 = arith.constant 0 : index
    %c0_5 = arith.constant 0 : index
    %5 = vector.load %arg4[%c0_3, %c0_4, %c0_5] : memref<1x128x128xbf16, #tpu.memory_space<vmem>>, vector<1x128x128xbf16>
    %6 = vector.shape_cast %5 : vector<1x128x128xbf16> to vector<128x128xbf16>
    %cst = arith.constant dense<0.000000e+00> : vector<128x128xf32>
    %7 = tpu.matmul %4, %6, %cst {dimension_numbers = #tpu.dot_dimension_numbers<[1], [1], [0], [0], [0, 0, 1, 0], [], []>} : vector<128x128xbf16>, vector<128x128xbf16>, vector<128x128xf32> -> vector<128x128xf32>
    %c0_6 = arith.constant 0 : index
    %c0_7 = arith.constant 0 : index
    %8 = vector.load %arg9[%c0_6, %c0_7] : memref<128x1xf32, #tpu.memory_space<vmem>>, vector<128x1xf32>
    %cst_8 = arith.constant dense<0xFF800000> : vector<128xf32>
    %9 = vector.multi_reduction <maximumf>, %7, %cst_8 [1] : vector<128x128xf32> to vector<128xf32>
    %10 = vector.shape_cast %9 : vector<128xf32> to vector<128x1xf32>
    %11 = arith.maximumf %8, %10 : vector<128x1xf32>
    %12 = arith.subf %8, %11 : vector<128x1xf32>
    %13 = math.exp %12 : vector<128x1xf32>
    %14 = vector.broadcast %11 : vector<128x1xf32> to vector<128x128xf32>
    %15 = arith.subf %7, %14 : vector<128x128xf32>
    %16 = math.exp %15 : vector<128x128xf32>
    %c0_9 = arith.constant 0 : index
    %c0_10 = arith.constant 0 : index
    %17 = vector.load %arg10[%c0_9, %c0_10] : memref<128x1xf32, #tpu.memory_space<vmem>>, vector<128x1xf32>
    %18 = arith.mulf %13, %17 : vector<128x1xf32>
    %cst_11 = arith.constant dense<0.000000e+00> : vector<128xf32>
    %19 = vector.multi_reduction <add>, %16, %cst_11 [1] : vector<128x128xf32> to vector<128xf32>
    %20 = vector.shape_cast %19 : vector<128xf32> to vector<128x1xf32>
    %21 = arith.addf %18, %20 : vector<128x1xf32>
    %c0_12 = arith.constant 0 : index
    %c0_13 = arith.constant 0 : index
    %22 = vector.load %arg10[%c0_12, %c0_13] : memref<128x1xf32, #tpu.memory_space<vmem>>, vector<128x1xf32>
    tpu.vector_store %arg10[%c0_12, %c0_13], %21 {strides = array<i32>} : memref<128x1xf32, #tpu.memory_space<vmem>>, vector<128x1xf32>,
    %c0_14 = arith.constant 0 : index
    %c0_15 = arith.constant 0 : index
    %23 = vector.load %arg11[%c0_14, %c0_15] : memref<128x128xf32, #tpu.memory_space<vmem>>, vector<128x128xf32>
    %24 = vector.broadcast %13 : vector<128x1xf32> to vector<128x128xf32>
    %25 = arith.mulf %24, %23 : vector<128x128xf32>
    %26 = arith.truncf %16 : vector<128x128xf32> to vector<128x128xbf16>
    %c0_16 = arith.constant 0 : index
    %c0_17 = arith.constant 0 : index
    %c0_18 = arith.constant 0 : index
    %27 = vector.load %arg5[%c0_16, %c0_17, %c0_18] : memref<1x128x128xbf16, #tpu.memory_space<vmem>>, vector<1x128x128xbf16>
    %28 = vector.shape_cast %27 : vector<1x128x128xbf16> to vector<128x128xbf16>
    %cst_19 = arith.constant dense<0.000000e+00> : vector<128x128xf32>
    %29 = tpu.matmul %26, %28, %cst_19 {dimension_numbers = #tpu.dot_dimension_numbers<[1], [0], [0], [1], [0, 0, 1, 1], [], []>} : vector<128x128xbf16>, vector<128x128xbf16>, vector<128x128xf32> -> vector<128x128xf32>
    %30 = arith.addf %25, %29 : vector<128x128xf32>
    %c0_20 = arith.constant 0 : index
    %c0_21 = arith.constant 0 : index
    %31 = vector.load %arg11[%c0_20, %c0_21] : memref<128x128xf32, #tpu.memory_space<vmem>>, vector<128x128xf32>
    tpu.vector_store %arg11[%c0_20, %c0_21], %30 {strides = array<i32>} : memref<128x128xf32, #tpu.memory_space<vmem>>, vector<128x128xf32>,
    %c0_22 = arith.constant 0 : index
    %c0_23 = arith.constant 0 : index
    %32 = vector.load %arg9[%c0_22, %c0_23] : memref<128x1xf32, #tpu.memory_space<vmem>>, vector<128x1xf32>
    tpu.vector_store %arg9[%c0_22, %c0_23], %11 {strides = array<i32>} : memref<128x1xf32, #tpu.memory_space<vmem>>, vector<128x1xf32>,
    %c1_i32 = arith.constant 1 : i32
    %33 = arith.cmpi eq, %arg2, %c1_i32 : i32
    %34 = arith.extui %33 : i1 to i32
    %c0_i32_24 = arith.constant 0 : i32
    %35 = arith.cmpi ne, %34, %c0_i32_24 : i32
    scf.if %35 {
      %c0_25 = arith.constant 0 : index
      %c0_26 = arith.constant 0 : index
      %36 = vector.load %arg11[%c0_25, %c0_26] : memref<128x128xf32, #tpu.memory_space<vmem>>, vector<128x128xf32>
      %c0_27 = arith.constant 0 : index
      %c0_28 = arith.constant 0 : index
      %37 = vector.load %arg10[%c0_27, %c0_28] : memref<128x1xf32, #tpu.memory_space<vmem>>, vector<128x1xf32>
      %38 = tpu.reciprocal %37 {approx = true} : vector<128x1xf32> -> vector<128x1xf32>
      %39 = vector.broadcast %38 : vector<128x1xf32> to vector<128x128xf32>
      %40 = arith.mulf %36, %39 : vector<128x128xf32>
      %41 = arith.truncf %40 : vector<128x128xf32> to vector<128x128xbf16>
      %c0_29 = arith.constant 0 : index
      %c0_30 = arith.constant 0 : index
      %42 = vector.load %arg6[%c0_29, %c0_30] : memref<128x128xbf16, #tpu.memory_space<vmem>>, vector<128x128xbf16>
      %cst_31 = arith.constant dense<0.000000e+00> : vector<128x128xf32>
      %43 = tpu.matmul %41, %42, %cst_31 {dimension_numbers = #tpu.dot_dimension_numbers<[1], [0], [0], [1], [0, 0, 1, 1], [], []>} : vector<128x128xbf16>, vector<128x128xbf16>, vector<128x128xf32> -> vector<128x128xf32>
      %c0_32 = arith.constant 0 : index
      %c0_33 = arith.constant 0 : index
      %44 = vector.load %arg7[%c0_32, %c0_33] : memref<1x128xf32, #tpu.memory_space<vmem>>, vector<1x128xf32>
      %45 = vector.broadcast %44 : vector<1x128xf32> to vector<128x128xf32>
      %46 = arith.addf %43, %45 : vector<128x128xf32>
      %cst_34 = arith.constant 0.000000e+00 : f32
      %47 = vector.broadcast %cst_34 : f32 to vector<128x128xf32>
      %48 = arith.maximumf %46, %47 : vector<128x128xf32>
      %c0_35 = arith.constant 0 : index
      %c0_36 = arith.constant 0 : index
      %c0_37 = arith.constant 0 : index
      %49 = vector.load %arg8[%c0_35, %c0_36, %c0_37] : memref<1x128x128xf32, #tpu.memory_space<vmem>>, vector<1x128x128xf32>
      %50 = vector.shape_cast %49 : vector<1x128x128xf32> to vector<128x128xf32>
      %51 = vector.shape_cast %48 : vector<128x128xf32> to vector<1x128x128xf32>
      tpu.vector_store %arg8[%c0_35, %c0_36, %c0_37], %51 {strides = array<i32>} : memref<1x128x128xf32, #tpu.memory_space<vmem>>, vector<1x128x128xf32>,
    } else {
    }
    return
  }
  func.func @transform_0(%arg0: i32, %arg1: i32, %arg2: i32) -> (i32, i32, i32) {
    %c0_i32 = arith.constant 0 : i32
    %c0_i32_0 = arith.constant 0 : i32
    return %arg0, %arg1, %c0_i32 : i32, i32, i32
  }
  func.func @transform_1(%arg0: i32, %arg1: i32, %arg2: i32) -> (i32, i32, i32) {
    %c0_i32 = arith.constant 0 : i32
    %c0_i32_0 = arith.constant 0 : i32
    return %arg0, %arg2, %c0_i32 : i32, i32, i32
  }
  func.func @transform_2(%arg0: i32, %arg1: i32, %arg2: i32) -> (i32, i32, i32) {
    %c0_i32 = arith.constant 0 : i32
    %c0_i32_0 = arith.constant 0 : i32
    return %arg0, %arg2, %c0_i32 : i32, i32, i32
  }
  func.func @transform_3(%arg0: i32, %arg1: i32, %arg2: i32) -> (i32, i32) {
    %c0_i32 = arith.constant 0 : i32
    %c0_i32_0 = arith.constant 0 : i32
    %c0_i32_1 = arith.constant 0 : i32
    return %c0_i32, %c0_i32_0 : i32, i32
  }
  func.func @transform_4(%arg0: i32, %arg1: i32, %arg2: i32) -> (i32, i32) {
    %c0_i32 = arith.constant 0 : i32
    %c0_i32_0 = arith.constant 0 : i32
    %c0_i32_1 = arith.constant 0 : i32
    return %c0_i32, %c0_i32_0 : i32, i32
  }
  func.func @transform_5(%arg0: i32, %arg1: i32, %arg2: i32) -> (i32, i32, i32) {
    %c0_i32 = arith.constant 0 : i32
    %c0_i32_0 = arith.constant 0 : i32
    return %arg0, %arg1, %c0_i32 : i32, i32, i32
  }
}

</mosaic_0001>

<llo_original>
// kernel: baseoc_context_forward.2
$region0: #{baseoc_context_forward.2}
  #allocation0 [shape = 'u32[]', space=smem, size = 0x4, offset = 0x4, fixed_abs, tag = 'smem constant byte address 0x4 - core index']
  #allocation1 [shape = 'u32[144,128]{1,0:T(1,128)}', space=vmem, size = 0x12000, scoped, tag = 'internal scratch']
  %s0 = inlined_call_operand.vmem [shape: bf16[2,256,128], index: 0, kind: input, shape index: {}]
  %s1 = inlined_call_operand.vmem [shape: bf16[128,128], index: 1, kind: input, shape index: {}]
  %s2 = inlined_call_operand.vmem [shape: f32[1,128], index: 2, kind: input, shape index: {}]
  %s3 = inlined_call_operand.vmem [shape: bf16[128,128], index: 3, kind: input, shape index: {}]
  %s4 = inlined_call_operand.vmem [shape: f32[1,128], index: 4, kind: input, shape index: {}]
  %s5 = inlined_call_operand.vmem [shape: bf16[2,256,128], index: 5, kind: output, shape index: {0}]
  %s6 = inlined_call_operand.vmem [shape: bf16[2,256,128], index: 6, kind: output, shape index: {1}]
  %7 = xla_tuple %s5, %s6
  %s8 = sld [smem:[#allocation0]]
  $region61: #{baseoc_context_forward.2} parent=0
    _
  %s10 = ssub.s32 1, %s8
  %s11 = scalar_select 0, %s10, %s8
  loop: start=0, step=1, limit=6
  $region2: #{baseoc_context_forward.2} parent=0 // loop_pre_header
    _
  $region3: #{baseoc_context_forward.2} parent=0 // loop_header
    %s13 = sphi 0, %s17
    %p14 = scmp.ge.s32.totalorder %s13, 6
    %s20 = sphi 0, %s32
    %s21 = sphi 0, %s28
    %s22 = sphi 0, %s20
    %s23 = sphi 0, %s21
    %s24 = sphi 0, %s22
    %s25 = sphi 0, %s23
    %s37 = sphi 0, %s39
    %s40 = sphi 0, %s37
    %s41 = sphi 0, %s40
    %s57 = sphi 0, %s41
    %s61 = sphi 0, %s61
    %s63 = sphi 0, %s61
    %s64 = sphi 0, %s63
    %s78 = sphi 0, %s64
    %s82 = sphi 0, %s82
    %s84 = sphi 0, %s82
    %s85 = sphi 0, %s84
    %s99 = sphi 0, %s85
    %s103 = sphi 0, %s103
    %s105 = sphi 0, %s103
    %s106 = sphi 0, %s105
    %s120 = sphi 0, %s106
    %s124 = sphi 0, %s124
    %s126 = sphi 0, %s124
    %s127 = sphi 0, %s126
    %s141 = sphi 0, %s127
    %s149 = sphi 0, %s151
    %s152 = sphi 0, %s149
    %s153 = sphi 0, %s152
    %s169 = sphi 0, %s153
    %s177 = sphi 0, %s179
    %s180 = sphi 0, %s177
    %s181 = sphi 0, %s180
    %s197 = sphi 0, %s181
  $region4: #{baseoc_context_forward.2} parent=0 // loop_header_branch
    %16 = sbr.rel (%p14) target = $region8
  $region5: #{baseoc_context_forward.2} parent=0 // loop_body
    %s18 = ssub.s32 %s13, 1
    %s19 = ssub.s32 %s13, 2
    %s26 = sadd.s32 1, %s21
    %p27 = scmp.ge.s32.totalorder %s26, 2
    %s28 = scalar_select %p27, 0, %s26
    %s29 = sadd.s32 1, %s20
    %s30 = scalar_select %p27, %s29, %s20
    %p31 = scmp.ge.s32.totalorder %s30, 2
    %s32 = scalar_select %p31, 0, %s30
    %s33 = ssub.s32 %s20, %s32
    %s34 = ssub.s32 %s21, %s28
    %s35 = sor.u32 %s33, %s34
    %p36 = scmp.eq.s32.totalorder %s35, 0
    %s38 = sadd.s32 %s37, 1
    %s39 = scalar_select %p36, %s37, %s38
    %p42 = pneg %p36
    %p43 = scmp.eq.s32.totalorder %s13, 3
    %p44 = por %p42, %p43
    %p45 = scmp.ne.s32.totalorder %s37, %s40
    %p46 = scmp.eq.s32.totalorder %s13, 0
    %p47 = por %p45, %p46
    %p48 = scmp.ne.s32.totalorder %s37, %s40
    %p49 = scmp.eq.s32.totalorder %s18, 3
    %p50 = por %p48, %p49
    %p51 = scmp.ne.s32.totalorder %s40, %s41
    %p52 = scmp.eq.s32.totalorder %s18, 0
    %p53 = por %p51, %p52
    %p54 = scmp.ne.s32.totalorder %s40, %s41
    %p55 = scmp.eq.s32.totalorder %s19, 3
    %p56 = por %p54, %p55
    %p58 = scmp.ne.s32.totalorder %s41, %s57
    %p59 = scmp.eq.s32.totalorder %s19, 0
    %p60 = por %p58, %p59
    %s62 = sadd.s32 %s61, 1
    %p65 = scmp.eq.s32.totalorder %s13, 3
    %p66 = scmp.ne.s32.totalorder %s61, %s63
    %p67 = scmp.eq.s32.totalorder %s13, 0
    %p68 = por %p66, %p67
    %p69 = scmp.ne.s32.totalorder %s61, %s63
    %p70 = scmp.eq.s32.totalorder %s18, 3
    %p71 = por %p69, %p70
    %p72 = scmp.ne.s32.totalorder %s63, %s64
    %p73 = scmp.eq.s32.totalorder %s18, 0
    %p74 = por %p72, %p73
    %p75 = scmp.ne.s32.totalorder %s63, %s64
    %p76 = scmp.eq.s32.totalorder %s19, 3
    %p77 = por %p75, %p76
    %p79 = scmp.ne.s32.totalorder %s64, %s78
    %p80 = scmp.eq.s32.totalorder %s19, 0
    %p81 = por %p79, %p80
    %s83 = sadd.s32 %s82, 1
    %p86 = scmp.eq.s32.totalorder %s13, 3
    %p87 = scmp.ne.s32.totalorder %s82, %s84
    %p88 = scmp.eq.s32.totalorder %s13, 0
    %p89 = por %p87, %p88
    %p90 = scmp.ne.s32.totalorder %s82, %s84
    %p91 = scmp.eq.s32.totalorder %s18, 3
    %p92 = por %p90, %p91
    %p93 = scmp.ne.s32.totalorder %s84, %s85
    %p94 = scmp.eq.s32.totalorder %s18, 0
    %p95 = por %p93, %p94
    %p96 = scmp.ne.s32.totalorder %s84, %s85
    %p97 = scmp.eq.s32.totalorder %s19, 3
    %p98 = por %p96, %p97
    %p100 = scmp.ne.s32.totalorder %s85, %s99
    %p101 = scmp.eq.s32.totalorder %s19, 0
    %p102 = por %p100, %p101
    %s104 = sadd.s32 %s103, 1
    %p107 = scmp.eq.s32.totalorder %s13, 3
    %p108 = scmp.ne.s32.totalorder %s103, %s105
    %p109 = scmp.eq.s32.totalorder %s13, 0
    %p110 = por %p108, %p109
    %p111 = scmp.ne.s32.totalorder %s103, %s105
    %p112 = scmp.eq.s32.totalorder %s18, 3
    %p113 = por %p111, %p112
    %p114 = scmp.ne.s32.totalorder %s105, %s106
    %p115 = scmp.eq.s32.totalorder %s18, 0
    %p116 = por %p114, %p115
    %p117 = scmp.ne.s32.totalorder %s105, %s106
    %p118 = scmp.eq.s32.totalorder %s19, 3
    %p119 = por %p117, %p118
    %p121 = scmp.ne.s32.totalorder %s106, %s120
    %p122 = scmp.eq.s32.totalorder %s19, 0
    %p123 = por %p121, %p122
    %s125 = sadd.s32 %s124, 1
    %p128 = scmp.eq.s32.totalorder %s13, 3
    %p129 = scmp.ne.s32.totalorder %s124, %s126
    %p130 = scmp.eq.s32.totalorder %s13, 0
    %p131 = por %p129, %p130
    %p132 = scmp.ne.s32.totalorder %s124, %s126
    %p133 = scmp.eq.s32.totalorder %s18, 3
    %p134 = por %p132, %p133
    %p135 = scmp.ne.s32.totalorder %s126, %s127
    %p136 = scmp.eq.s32.totalorder %s18, 0
    %p137 = por %p135, %p136
    %p138 = scmp.ne.s32.totalorder %s126, %s127
    %p139 = scmp.eq.s32.totalorder %s19, 3
    %p140 = por %p138, %p139
    %p142 = scmp.ne.s32.totalorder %s127, %s141
    %p143 = scmp.eq.s32.totalorder %s19, 0
    %p144 = por %p142, %p143
    %s145 = ssub.s32 %s20, %s32
    %s146 = ssub.s32 %s21, %s28
    %s147 = sor.u32 %s145, %s146
    %p148 = scmp.eq.s32.totalorder %s147, 0
    %s150 = sadd.s32 %s149, 1
    %s151 = scalar_select %p148, %s149, %s150
    %p154 = pneg %p148
    %p155 = scmp.eq.s32.totalorder %s13, 3
    %p156 = por %p154, %p155
    %p157 = scmp.ne.s32.totalorder %s149, %s152
    %p158 = scmp.eq.s32.totalorder %s13, 0
    %p159 = por %p157, %p158
    %p160 = scmp.ne.s32.totalorder %s149, %s152
    %p161 = scmp.eq.s32.totalorder %s18, 3
    %p162 = por %p160, %p161
    %p163 = scmp.ne.s32.totalorder %s152, %s153
    %p164 = scmp.eq.s32.totalorder %s18, 0
    %p165 = por %p163, %p164
    %p166 = scmp.ne.s32.totalorder %s152, %s153
    %p167 = scmp.eq.s32.totalorder %s19, 3
    %p168 = por %p166, %p167
    %p170 = scmp.ne.s32.totalorder %s153, %s169
    %p171 = scmp.eq.s32.totalorder %s19, 0
    %p172 = por %p170, %p171
    %s173 = ssub.s32 %s20, %s32
    %s174 = ssub.s32 %s21, %s28
    %s175 = sor.u32 %s173, %s174
    %p176 = scmp.eq.s32.totalorder %s175, 0
    %s178 = sadd.s32 %s177, 1
    %s179 = scalar_select %p176, %s177, %s178
    %p182 = pneg %p176
    %p183 = scmp.eq.s32.totalorder %s13, 3
    %p184 = por %p182, %p183
    %p185 = scmp.ne.s32.totalorder %s177, %s180
    %p186 = scmp.eq.s32.totalorder %s13, 0
    %p187 = por %p185, %p186
    %p188 = scmp.ne.s32.totalorder %s177, %s180
    %p189 = scmp.eq.s32.totalorder %s18, 3
    %p190 = por %p188, %p189
    %p191 = scmp.ne.s32.totalorder %s180, %s181
    %p192 = scmp.eq.s32.totalorder %s18, 0
    %p193 = por %p191, %p192
    %p194 = scmp.ne.s32.totalorder %s180, %s181
    %p195 = scmp.eq.s32.totalorder %s19, 3
    %p196 = por %p194, %p195
    %p198 = scmp.ne.s32.totalorder %s181, %s197
    %p199 = scmp.eq.s32.totalorder %s19, 0
    %p200 = por %p198, %p199
    %p201 = scmp.le.s32.totalorder 1, %s13
    %p202 = scmp.lt.s32.totalorder %s13, 5
    %p203 = pnand %p201, %p202
    %p204 = pneg %p203
    // Predicated region
    $region9: #{baseoc_context_forward.2} parent=5 // pred_check
      _
    $region10: #{baseoc_context_forward.2} parent=5 // pred_check_branch
      %206 = sbr.rel (%p203) target = $region12
    $region11: #{baseoc_context_forward.2} parent=5 // pred_region
      %s207 = ssub.s32 %s13, 1
      // Predicated region
      $region13: #{baseoc_context_forward.2} parent=11 // pred_check
        %p208 = pneg %p74
      $region14: #{baseoc_context_forward.2} parent=11 // pred_check_branch
        %210 = sbr.rel (%p208) target = $region16
      $region15: #{baseoc_context_forward.2} parent=11 // pred_region
        _
      $region16: #{baseoc_context_forward.2} parent=11 // pred_fallthru
        _
      // Predicated region
      $region17: #{baseoc_context_forward.2} parent=11 // pred_check
        %p211 = pneg %p95
      $region18: #{baseoc_context_forward.2} parent=11 // pred_check_branch
        %213 = sbr.rel (%p211) target = $region20
      $region19: #{baseoc_context_forward.2} parent=11 // pred_region
        _
      $region20: #{baseoc_context_forward.2} parent=11 // pred_fallthru
        _
      // Predicated region
      $region21: #{baseoc_context_forward.2} parent=11 // pred_check
        %p214 = pneg %p116
      $region22: #{baseoc_context_forward.2} parent=11 // pred_check_branch
        %216 = sbr.rel (%p214) target = $region24
      $region23: #{baseoc_context_forward.2} parent=11 // pred_region
        _
      $region24: #{baseoc_context_forward.2} parent=11 // pred_fallthru
        _
      // Predicated region
      $region25: #{baseoc_context_forward.2} parent=11 // pred_check
        %p217 = pneg %p137
      $region26: #{baseoc_context_forward.2} parent=11 // pred_check_branch
        %219 = sbr.rel (%p217) target = $region28
      $region27: #{baseoc_context_forward.2} parent=11 // pred_region
        _
      $region28: #{baseoc_context_forward.2} parent=11 // pred_fallthru
        _
    $region12: #{baseoc_context_forward.2} parent=5 // pred_fallthru
      _
    %p220 = scmp.lt.s32.totalorder %s13, 4
    // Predicated region
    $region29: #{baseoc_context_forward.2} parent=5 // pred_check
      %p221 = pneg %p220
    $region30: #{baseoc_context_forward.2} parent=5 // pred_check_branch
      %223 = sbr.rel (%p221) target = $region32
    $region31: #{baseoc_context_forward.2} parent=5 // pred_region
      // Predicated region
      $region33: #{baseoc_context_forward.2} parent=31 // pred_check
        %p224 = pneg %p47
      $region34: #{baseoc_context_forward.2} parent=31 // pred_check_branch
        %226 = sbr.rel (%p224) target = $region36
      $region35: #{baseoc_context_forward.2} parent=31 // pred_region
        %s227 = smul.u32 16, %s21
        %p228 = scmp.lt.s32.totalorder %s20, 1
        %s229 = scalar_select %p228, %s20, 1
        %p230 = scmp.lt.s32.totalorder %s227, 31
        %s231 = scalar_select %p230, %s227, 31
        %s232 = smul.addr %s229, 32
        %s233 = sadd.s32 %s231, %s232
        %s234 = smul.addr %s233, 4
        %s235 = scalar_lea.vmem %s0, %s234
        %s236 = smul.u32 16, %s21
      $region36: #{baseoc_context_forward.2} parent=31 // pred_fallthru
        _
    $region32: #{baseoc_context_forward.2} parent=5 // pred_fallthru
      _
    %p237 = scmp.le.s32.totalorder 1, %s13
    %p238 = scmp.lt.s32.totalorder %s13, 5
    %p239 = pnand %p237, %p238
    %p240 = pneg %p239
    // Predicated region
    $region37: #{baseoc_context_forward.2} parent=5 // pred_check
      _
    $region38: #{baseoc_context_forward.2} parent=5 // pred_check_branch
      %242 = sbr.rel (%p239) target = $region40
    $region39: #{baseoc_context_forward.2} parent=5 // pred_region
      %s243 = ssub.s32 %s13, 1
      %s244 = smul.u32 16, %s23
      %p245 = scmp.lt.s32.totalorder %s22, 1
      %s246 = scalar_select %p245, %s22, 1
      %p247 = scmp.lt.s32.totalorder %s244, 31
      %s248 = scalar_select %p247, %s244, 31
      %s249 = smul.addr %s246, 32
      %s250 = sadd.s32 %s248, %s249
      %s251 = smul.addr %s250, 4
      %s252 = scalar_lea.vmem %s0, %s251
      %p253 = pneg %p53
      %p254 = pneg %p50
      %p255 = pneg %p74
      %p256 = pneg %p71
      %p257 = pneg %p95
      %p258 = pneg %p92
      %p259 = pneg %p116
      %p260 = pneg %p113
      %p261 = pneg %p137
      %p262 = pneg %p134
      %p263 = pneg %p165
      %p264 = pneg %p162
      %s265 = smul.u32 16, %s23
      %p266 = scmp.lt.s32.totalorder %s22, 1
      %s267 = scalar_select %p266, %s22, 1
      %p268 = scmp.lt.s32.totalorder %s265, 31
      %s269 = scalar_select %p268, %s265, 31
      %s270 = smul.addr %s267, 32
      %s271 = sadd.s32 %s269, %s270
      %s272 = smul.addr %s271, 4
      %s273 = scalar_lea.vmem %s5, %s272
      %p274 = pneg %p193
      %p275 = pneg %p190
      %s276 = smul.u32 16, %s23
      %p277 = scmp.lt.s32.totalorder %s22, 1
      %s278 = scalar_select %p277, %s22, 1
      %p279 = scmp.lt.s32.totalorder %s276, 31
      %s280 = scalar_select %p279, %s276, 31
      %s281 = smul.addr %s278, 32
      %s282 = sadd.s32 %s280, %s281
      %s283 = smul.addr %s282, 4
      %s284 = scalar_lea.vmem %s6, %s283
      %s285 = smul.u32 16, %s23
      %p286 = scmp.lt.s32.totalorder %s22, 1
      %s287 = scalar_select %p286, %s22, 1
      %p288 = scmp.lt.s32.totalorder %s285, 31
      %s289 = scalar_select %p288, %s285, 31
      %s290 = smul.addr %s287, 32
      %s291 = sadd.s32 %s289, %s290
      %s292 = smul.addr %s291, 4
      %s293 = scalar_lea.vmem %s0, %s292
      %s294 = smul.u32 16, %s23
      %s295 = smul.u32 16, %s23
      %p296 = scmp.lt.s32.totalorder %s22, 1
      %s297 = scalar_select %p296, %s22, 1
      %p298 = scmp.lt.s32.totalorder %s295, 31
      %s299 = scalar_select %p298, %s295, 31
      %s300 = smul.addr %s297, 32
      %s301 = sadd.s32 %s299, %s300
      %s302 = smul.addr %s301, 4
      %s303 = scalar_lea.vmem %s5, %s302
      %s304 = smul.u32 16, %s23
      %s305 = smul.u32 16, %s23
      %p306 = scmp.lt.s32.totalorder %s22, 1
      %s307 = scalar_select %p306, %s22, 1
      %p308 = scmp.lt.s32.totalorder %s305, 31
      %s309 = scalar_select %p308, %s305, 31
      %s310 = smul.addr %s307, 32
      %s311 = sadd.s32 %s309, %s310
      %s312 = smul.addr %s311, 4
      %s313 = scalar_lea.vmem %s6, %s312
      %s314 = smul.u32 16, %s23
      %v316 = vld [vmem:[%s293] sm:$0xf]
      %v317 = vld [vmem:[%s293 + $0x4] sm:$0xf]
      %v318 = vld [vmem:[%s293 + $0x8] sm:$0xf]
      %v319 = vld [vmem:[%s293 + $0xc] sm:$0xf]
      %v320 = vld [vmem:[%s293 + $0x10] sm:$0xf]
      %v321 = vld [vmem:[%s293 + $0x14] sm:$0xf]
      %v322 = vld [vmem:[%s293 + $0x18] sm:$0xf]
      %v323 = vld [vmem:[%s293 + $0x1c] sm:$0xf]
      %v324 = vld [vmem:[%s293 + $0x20] sm:$0xf]
      %v325 = vld [vmem:[%s293 + $0x24] sm:$0xf]
      %v326 = vld [vmem:[%s293 + $0x28] sm:$0xf]
      %v327 = vld [vmem:[%s293 + $0x2c] sm:$0xf]
      %v328 = vld [vmem:[%s293 + $0x30] sm:$0xf]
      %v329 = vld [vmem:[%s293 + $0x34] sm:$0xf]
      %v330 = vld [vmem:[%s293 + $0x38] sm:$0xf]
      %v331 = vld [vmem:[%s293 + $0x3c] sm:$0xf]
      %v332 = vld [vmem:[%s1] sm:$0xf]
      %v333 = vld [vmem:[%s1 + $0x4] sm:$0xf]
      %v334 = vld [vmem:[%s1 + $0x8] sm:$0xf]
      %v335 = vld [vmem:[%s1 + $0xc] sm:$0xf]
      %v336 = vld [vmem:[%s1 + $0x10] sm:$0xf]
      %v337 = vld [vmem:[%s1 + $0x14] sm:$0xf]
      %v338 = vld [vmem:[%s1 + $0x18] sm:$0xf]
      %v339 = vld [vmem:[%s1 + $0x1c] sm:$0xf]
      %v340 = vld [vmem:[%s1 + $0x20] sm:$0xf]
      %v341 = vld [vmem:[%s1 + $0x24] sm:$0xf]
      %v342 = vld [vmem:[%s1 + $0x28] sm:$0xf]
      %v343 = vld [vmem:[%s1 + $0x2c] sm:$0xf]
      %v344 = vld [vmem:[%s1 + $0x30] sm:$0xf]
      %v345 = vld [vmem:[%s1 + $0x34] sm:$0xf]
      %v346 = vld [vmem:[%s1 + $0x38] sm:$0xf]
      %v347 = vld [vmem:[%s1 + $0x3c] sm:$0xf]
      %v348 = vld [vmem:[%s2] sm:$0x1]
      %v350 = vlaneseq
      %v351 = vshrl.u32 %v350, 7
      %v352 = vsub.s32 0, %v351
      %v353 = vrot.slane %v348, %v352
      %v371 = vunpack.c.l.b16 %v316
      %v372 = vunpack.c.l.b16 %v317
      %v373 = vunpack.c.l.b16 %v318
      %v374 = vunpack.c.l.b16 %v319
      %v375 = vunpack.c.l.b16 %v320
      %v376 = vunpack.c.l.b16 %v321
      %v377 = vunpack.c.l.b16 %v322
      %v378 = vunpack.c.l.b16 %v323
      %v379 = vunpack.c.l.b16 %v324
      %v380 = vunpack.c.l.b16 %v325
      %v381 = vunpack.c.l.b16 %v326
      %v382 = vunpack.c.l.b16 %v327
      %v383 = vunpack.c.l.b16 %v328
      %v384 = vunpack.c.l.b16 %v329
      %v385 = vunpack.c.l.b16 %v330
      %v386 = vunpack.c.l.b16 %v331
      %v387 = vpack.c.b16 %v372, %v371
      %v388 = vpack.c.b16 %v374, %v373
      %v389 = vpack.c.b16 %v376, %v375
      %v390 = vpack.c.b16 %v378, %v377
      %v391 = vpack.c.b16 %v380, %v379
      %v392 = vpack.c.b16 %v382, %v381
      %v393 = vpack.c.b16 %v384, %v383
      %v394 = vpack.c.b16 %v386, %v385
      %v419 = vunpack.c.l.b16 %v332
      %v420 = vunpack.c.l.b16 %v333
      %v421 = vunpack.c.l.b16 %v334
      %v422 = vunpack.c.l.b16 %v335
      %v423 = vunpack.c.l.b16 %v336
      %v424 = vunpack.c.l.b16 %v337
      %v425 = vunpack.c.l.b16 %v338
      %v426 = vunpack.c.l.b16 %v339
      %v427 = vunpack.c.l.b16 %v340
      %v428 = vunpack.c.l.b16 %v341
      %v429 = vunpack.c.l.b16 %v342
      %v430 = vunpack.c.l.b16 %v343
      %v431 = vunpack.c.l.b16 %v344
      %v432 = vunpack.c.l.b16 %v345
      %v433 = vunpack.c.l.b16 %v346
      %v434 = vunpack.c.l.b16 %v347
      %v435 = vpack.c.b16 %v420, %v419
      %v436 = vpack.c.b16 %v422, %v421
      %v437 = vpack.c.b16 %v424, %v423
      %v438 = vpack.c.b16 %v426, %v425
      %v439 = vpack.c.b16 %v428, %v427
      %v440 = vpack.c.b16 %v430, %v429
      %v441 = vpack.c.b16 %v432, %v431
      %v442 = vpack.c.b16 %v434, %v433
      %451 = vmatprep.subr.bf16.mxu0 0
      %452 = vmatpush1.bf16.msra.mxu0 %v442
      %453 = vmatprep.subr.bf16.mxu0 0
      %454 = vmatpush1.bf16.msra.mxu0 %v441
      %455 = vmatprep.subr.bf16.mxu0 0
      %456 = vmatpush1.bf16.msra.mxu0 %v440
      %457 = vmatprep.subr.bf16.mxu0 0
      %458 = vmatpush1.bf16.msra.mxu0 %v439
      %459 = vmatprep.subr.bf16.mxu0 0
      %460 = vmatpush1.bf16.msra.mxu0 %v438
      %461 = vmatprep.subr.bf16.mxu0 0
      %462 = vmatpush1.bf16.msra.mxu0 %v437
      %463 = vmatprep.subr.bf16.mxu0 0
      %464 = vmatpush1.bf16.msra.mxu0 %v436
      %465 = vmatprep.subr.bf16.mxu0 0
      %466 = vmatpush1.bf16.msra.mxu0 %v435
      %467 = vmatprep.subr.bf16.mxu0 0
      %468 = vmatpush2.bf16.msra.mxu0 0
      %469 = vmatprep.subr.bf16.mxu0 0
      %470 = vmatpush2.bf16.msra.mxu0 0
      %471 = vmatprep.subr.bf16.mxu0 0
      %472 = vmatpush2.bf16.msra.mxu0 0
      %473 = vmatprep.subr.bf16.mxu0 0
      %474 = vmatpush2.bf16.msra.mxu0 0
      %475 = vmatprep.subr.bf16.mxu0 0
      %476 = vmatpush2.bf16.msra.mxu0 0
      %477 = vmatprep.subr.bf16.mxu0 0
      %478 = vmatpush2.bf16.msra.mxu0 0
      %479 = vmatprep.subr.bf16.mxu0 0
      %480 = vmatpush2.bf16.msra.mxu0 0
      %481 = vmatprep.subr.bf16.mxu0 0
      %482 = vmatpush2.bf16.msra.mxu0 0
      %483 = vmatprep.mubr.bf16.mxu0 0
      %484 = vmatmul.mubr.bf16.gmra.mxu0 %v387
      %v485 = vpop.f32.mrf.mxu0
      %v486 = vadd.f32 %v353, %v485
      %v487 = vpop.f32.mrf.mxu0
      %v488 = vpop.f32.mrf.mxu0
      %v489 = vadd.f32 %v353, %v488
      %v490 = vpop.f32.mrf.mxu0
      %491 = vmatprep.mubr.bf16.mxu0 0
      %492 = vmatmul.mubr.bf16.gmra.mxu0 %v388
      %v493 = vpop.f32.mrf.mxu0
      %v494 = vadd.f32 %v353, %v493
      %v495 = vpop.f32.mrf.mxu0
      %v496 = vpop.f32.mrf.mxu0
      %v497 = vadd.f32 %v353, %v496
      %v498 = vpop.f32.mrf.mxu0
      %499 = vmatprep.mubr.bf16.mxu0 0
      %500 = vmatmul.mubr.bf16.gmra.mxu0 %v389
      %v501 = vpop.f32.mrf.mxu0
      %v502 = vadd.f32 %v353, %v501
      %v503 = vpop.f32.mrf.mxu0
      %v504 = vpop.f32.mrf.mxu0
      %v505 = vadd.f32 %v353, %v504
      %v506 = vpop.f32.mrf.mxu0
      %507 = vmatprep.mubr.bf16.mxu0 0
      %508 = vmatmul.mubr.bf16.gmra.mxu0 %v390
      %v509 = vpop.f32.mrf.mxu0
      %v510 = vadd.f32 %v353, %v509
      %v511 = vpop.f32.mrf.mxu0
      %v512 = vpop.f32.mrf.mxu0
      %v513 = vadd.f32 %v353, %v512
      %v514 = vpop.f32.mrf.mxu0
      %515 = vmatprep.mubr.bf16.mxu0 0
      %516 = vmatmul.mubr.bf16.gmra.mxu0 %v391
      %v517 = vpop.f32.mrf.mxu0
      %v518 = vadd.f32 %v353, %v517
      %v519 = vpop.f32.mrf.mxu0
      %v520 = vpop.f32.mrf.mxu0
      %v521 = vadd.f32 %v353, %v520
      %v522 = vpop.f32.mrf.mxu0
      %523 = vmatprep.mubr.bf16.mxu0 0
      %524 = vmatmul.mubr.bf16.gmra.mxu0 %v392
      %v525 = vpop.f32.mrf.mxu0
      %v526 = vadd.f32 %v353, %v525
      %v527 = vpop.f32.mrf.mxu0
      %v528 = vpop.f32.mrf.mxu0
      %v529 = vadd.f32 %v353, %v528
      %v530 = vpop.f32.mrf.mxu0
      %531 = vmatprep.mubr.bf16.mxu0 0
      %532 = vmatmul.mubr.bf16.gmra.mxu0 %v393
      %v533 = vpop.f32.mrf.mxu0
      %v534 = vadd.f32 %v353, %v533
      %v535 = vpop.f32.mrf.mxu0
      %v536 = vpop.f32.mrf.mxu0
      %v537 = vadd.f32 %v353, %v536
      %v538 = vpop.f32.mrf.mxu0
      %539 = vmatprep.mubr.bf16.mxu0 0
      %540 = vmatmul.mubr.bf16.gmra.mxu0 %v394
      %v541 = vpop.f32.mrf.mxu0
      %v542 = vadd.f32 %v353, %v541
      %v543 = vpop.f32.mrf.mxu0
      %v544 = vpop.f32.mrf.mxu0
      %v545 = vadd.f32 %v353, %v544
      %v546 = vpop.f32.mrf.mxu0
      %547 = vdwg.mxu0
      %v548 = vmax.f32 %v486, 0.0
      %v549 = vmax.f32 %v489, 0.0
      %v550 = vmax.f32 %v494, 0.0
      %v551 = vmax.f32 %v497, 0.0
      %v552 = vmax.f32 %v502, 0.0
      %v553 = vmax.f32 %v505, 0.0
      %v554 = vmax.f32 %v510, 0.0
      %v555 = vmax.f32 %v513, 0.0
      %v556 = vmax.f32 %v518, 0.0
      %v557 = vmax.f32 %v521, 0.0
      %v558 = vmax.f32 %v526, 0.0
      %v559 = vmax.f32 %v529, 0.0
      %v560 = vmax.f32 %v534, 0.0
      %v561 = vmax.f32 %v537, 0.0
      %v562 = vmax.f32 %v542, 0.0
      %v563 = vmax.f32 %v545, 0.0
      %v564 = vpack.c.bf16 %v549, %v548
      %v565 = vpack.c.bf16 %v551, %v550
      %v566 = vpack.c.bf16 %v553, %v552
      %v567 = vpack.c.bf16 %v555, %v554
      %v568 = vpack.c.bf16 %v557, %v556
      %v569 = vpack.c.bf16 %v559, %v558
      %v570 = vpack.c.bf16 %v561, %v560
      %v571 = vpack.c.bf16 %v563, %v562
      %v580 = vunpack.c.l.b16 %v564
      %v581 = vunpack.c.h.b16 %v564
      %v582 = vunpack.c.l.b16 %v565
      %v583 = vunpack.c.h.b16 %v565
      %v584 = vunpack.c.l.b16 %v566
      %v585 = vunpack.c.h.b16 %v566
      %v586 = vunpack.c.l.b16 %v567
      %v587 = vunpack.c.h.b16 %v567
      %v588 = vunpack.c.l.b16 %v568
      %v589 = vunpack.c.h.b16 %v568
      %v590 = vunpack.c.l.b16 %v569
      %v591 = vunpack.c.h.b16 %v569
      %v592 = vunpack.c.l.b16 %v570
      %v593 = vunpack.c.h.b16 %v570
      %v594 = vunpack.c.l.b16 %v571
      %v595 = vunpack.c.h.b16 %v571
      %v596 = vpack.c.b16 %v580, %v580
      %v597 = vpack.c.b16 %v581, %v581
      %v598 = vpack.c.b16 %v582, %v582
      %v599 = vpack.c.b16 %v583, %v583
      %v600 = vpack.c.b16 %v584, %v584
      %v601 = vpack.c.b16 %v585, %v585
      %v602 = vpack.c.b16 %v586, %v586
      %v603 = vpack.c.b16 %v587, %v587
      %v604 = vpack.c.b16 %v588, %v588
      %v605 = vpack.c.b16 %v589, %v589
      %v606 = vpack.c.b16 %v590, %v590
      %v607 = vpack.c.b16 %v591, %v591
      %v608 = vpack.c.b16 %v592, %v592
      %v609 = vpack.c.b16 %v593, %v593
      %v610 = vpack.c.b16 %v594, %v594
      %v611 = vpack.c.b16 %v595, %v595
      %628 = vst [vmem:[%s303] sm:$0xf] %v596
      %629 = vst [vmem:[%s303 + $0x4] sm:$0xf] %v597
      %630 = vst [vmem:[%s303 + $0x8] sm:$0xf] %v598
      %631 = vst [vmem:[%s303 + $0xc] sm:$0xf] %v599
      %632 = vst [vmem:[%s303 + $0x10] sm:$0xf] %v600
      %633 = vst [vmem:[%s303 + $0x14] sm:$0xf] %v601
      %634 = vst [vmem:[%s303 + $0x18] sm:$0xf] %v602
      %635 = vst [vmem:[%s303 + $0x1c] sm:$0xf] %v603
      %636 = vst [vmem:[%s303 + $0x20] sm:$0xf] %v604
      %637 = vst [vmem:[%s303 + $0x24] sm:$0xf] %v605
      %638 = vst [vmem:[%s303 + $0x28] sm:$0xf] %v606
      %639 = vst [vmem:[%s303 + $0x2c] sm:$0xf] %v607
      %640 = vst [vmem:[%s303 + $0x30] sm:$0xf] %v608
      %641 = vst [vmem:[%s303 + $0x34] sm:$0xf] %v609
      %642 = vst [vmem:[%s303 + $0x38] sm:$0xf] %v610
      %643 = vst [vmem:[%s303 + $0x3c] sm:$0xf] %v611
      %v644 = vld [vmem:[%s3] sm:$0xf]
      %v645 = vld [vmem:[%s3 + $0x4] sm:$0xf]
      %v646 = vld [vmem:[%s3 + $0x8] sm:$0xf]
      %v647 = vld [vmem:[%s3 + $0xc] sm:$0xf]
      %v648 = vld [vmem:[%s3 + $0x10] sm:$0xf]
      %v649 = vld [vmem:[%s3 + $0x14] sm:$0xf]
      %v650 = vld [vmem:[%s3 + $0x18] sm:$0xf]
      %v651 = vld [vmem:[%s3 + $0x1c] sm:$0xf]
      %v652 = vld [vmem:[%s3 + $0x20] sm:$0xf]
      %v653 = vld [vmem:[%s3 + $0x24] sm:$0xf]
      %v654 = vld [vmem:[%s3 + $0x28] sm:$0xf]
      %v655 = vld [vmem:[%s3 + $0x2c] sm:$0xf]
      %v656 = vld [vmem:[%s3 + $0x30] sm:$0xf]
      %v657 = vld [vmem:[%s3 + $0x34] sm:$0xf]
      %v658 = vld [vmem:[%s3 + $0x38] sm:$0xf]
      %v659 = vld [vmem:[%s3 + $0x3c] sm:$0xf]
      %v660 = vld [vmem:[%s4] sm:$0x1]
      %v662 = vlaneseq
      %v663 = vshrl.u32 %v662, 7
      %v664 = vsub.s32 0, %v663
      %v665 = vrot.slane %v660, %v664
      %v683 = vunpack.c.l.b16 %v644
      %v684 = vunpack.c.l.b16 %v645
      %v685 = vunpack.c.l.b16 %v646
      %v686 = vunpack.c.l.b16 %v647
      %v687 = vunpack.c.l.b16 %v648
      %v688 = vunpack.c.l.b16 %v649
      %v689 = vunpack.c.l.b16 %v650
      %v690 = vunpack.c.l.b16 %v651
      %v691 = vunpack.c.l.b16 %v652
      %v692 = vunpack.c.l.b16 %v653
      %v693 = vunpack.c.l.b16 %v654
      %v694 = vunpack.c.l.b16 %v655
      %v695 = vunpack.c.l.b16 %v656
      %v696 = vunpack.c.l.b16 %v657
      %v697 = vunpack.c.l.b16 %v658
      %v698 = vunpack.c.l.b16 %v659
      %v699 = vpack.c.b16 %v684, %v683
      %v700 = vpack.c.b16 %v686, %v685
      %v701 = vpack.c.b16 %v688, %v687
      %v702 = vpack.c.b16 %v690, %v689
      %v703 = vpack.c.b16 %v692, %v691
      %v704 = vpack.c.b16 %v694, %v693
      %v705 = vpack.c.b16 %v696, %v695
      %v706 = vpack.c.b16 %v698, %v697
      %715 = vmatprep.subr.bf16.mxu0 0
      %716 = vmatpush1.bf16.msra.mxu0 %v706
      %717 = vmatprep.subr.bf16.mxu0 0
      %718 = vmatpush1.bf16.msra.mxu0 %v705
      %719 = vmatprep.subr.bf16.mxu0 0
      %720 = vmatpush1.bf16.msra.mxu0 %v704
      %721 = vmatprep.subr.bf16.mxu0 0
      %722 = vmatpush1.bf16.msra.mxu0 %v703
      %723 = vmatprep.subr.bf16.mxu0 0
      %724 = vmatpush1.bf16.msra.mxu0 %v702
      %725 = vmatprep.subr.bf16.mxu0 0
      %726 = vmatpush1.bf16.msra.mxu0 %v701
      %727 = vmatprep.subr.bf16.mxu0 0
      %728 = vmatpush1.bf16.msra.mxu0 %v700
      %729 = vmatprep.subr.bf16.mxu0 0
      %730 = vmatpush1.bf16.msra.mxu0 %v699
      %731 = vmatprep.subr.bf16.mxu0 0
      %732 = vmatpush2.bf16.msra.mxu0 0
      %733 = vmatprep.subr.bf16.mxu0 0
      %734 = vmatpush2.bf16.msra.mxu0 0
      %735 = vmatprep.subr.bf16.mxu0 0
      %736 = vmatpush2.bf16.msra.mxu0 0
      %737 = vmatprep.subr.bf16.mxu0 0
      %738 = vmatpush2.bf16.msra.mxu0 0
      %739 = vmatprep.subr.bf16.mxu0 0
      %740 = vmatpush2.bf16.msra.mxu0 0
      %741 = vmatprep.subr.bf16.mxu0 0
      %742 = vmatpush2.bf16.msra.mxu0 0
      %743 = vmatprep.subr.bf16.mxu0 0
      %744 = vmatpush2.bf16.msra.mxu0 0
      %745 = vmatprep.subr.bf16.mxu0 0
      %746 = vmatpush2.bf16.msra.mxu0 0
      %747 = vmatprep.mubr.bf16.mxu0 0
      %748 = vmatmul.mubr.bf16.gmra.mxu0 %v387
      %v749 = vpop.f32.mrf.mxu0
      %v750 = vadd.f32 %v665, %v749
      %v751 = vpop.f32.mrf.mxu0
      %v752 = vpop.f32.mrf.mxu0
      %v753 = vadd.f32 %v665, %v752
      %v754 = vpop.f32.mrf.mxu0
      %755 = vmatprep.mubr.bf16.mxu0 0
      %756 = vmatmul.mubr.bf16.gmra.mxu0 %v388
      %v757 = vpop.f32.mrf.mxu0
      %v758 = vadd.f32 %v665, %v757
      %v759 = vpop.f32.mrf.mxu0
      %v760 = vpop.f32.mrf.mxu0
      %v761 = vadd.f32 %v665, %v760
      %v762 = vpop.f32.mrf.mxu0
      %763 = vmatprep.mubr.bf16.mxu0 0
      %764 = vmatmul.mubr.bf16.gmra.mxu0 %v389
      %v765 = vpop.f32.mrf.mxu0
      %v766 = vadd.f32 %v665, %v765
      %v767 = vpop.f32.mrf.mxu0
      %v768 = vpop.f32.mrf.mxu0
      %v769 = vadd.f32 %v665, %v768
      %v770 = vpop.f32.mrf.mxu0
      %771 = vmatprep.mubr.bf16.mxu0 0
      %772 = vmatmul.mubr.bf16.gmra.mxu0 %v390
      %v773 = vpop.f32.mrf.mxu0
      %v774 = vadd.f32 %v665, %v773
      %v775 = vpop.f32.mrf.mxu0
      %v776 = vpop.f32.mrf.mxu0
      %v777 = vadd.f32 %v665, %v776
      %v778 = vpop.f32.mrf.mxu0
      %779 = vmatprep.mubr.bf16.mxu0 0
      %780 = vmatmul.mubr.bf16.gmra.mxu0 %v391
      %v781 = vpop.f32.mrf.mxu0
      %v782 = vadd.f32 %v665, %v781
      %v783 = vpop.f32.mrf.mxu0
      %v784 = vpop.f32.mrf.mxu0
      %v785 = vadd.f32 %v665, %v784
      %v786 = vpop.f32.mrf.mxu0
      %787 = vmatprep.mubr.bf16.mxu0 0
      %788 = vmatmul.mubr.bf16.gmra.mxu0 %v392
      %v789 = vpop.f32.mrf.mxu0
      %v790 = vadd.f32 %v665, %v789
      %v791 = vpop.f32.mrf.mxu0
      %v792 = vpop.f32.mrf.mxu0
      %v793 = vadd.f32 %v665, %v792
      %v794 = vpop.f32.mrf.mxu0
      %795 = vmatprep.mubr.bf16.mxu0 0
      %796 = vmatmul.mubr.bf16.gmra.mxu0 %v393
      %v797 = vpop.f32.mrf.mxu0
      %v798 = vadd.f32 %v665, %v797
      %v799 = vpop.f32.mrf.mxu0
      %v800 = vpop.f32.mrf.mxu0
      %v801 = vadd.f32 %v665, %v800
      %v802 = vpop.f32.mrf.mxu0
      %803 = vmatprep.mubr.bf16.mxu0 0
      %804 = vmatmul.mubr.bf16.gmra.mxu0 %v394
      %v805 = vpop.f32.mrf.mxu0
      %v806 = vadd.f32 %v665, %v805
      %v807 = vpop.f32.mrf.mxu0
      %v808 = vpop.f32.mrf.mxu0
      %v809 = vadd.f32 %v665, %v808
      %v810 = vpop.f32.mrf.mxu0
      %811 = vdwg.mxu0
      %v812 = vpack.c.bf16 %v753, %v750
      %v813 = vpack.c.bf16 %v761, %v758
      %v814 = vpack.c.bf16 %v769, %v766
      %v815 = vpack.c.bf16 %v777, %v774
      %v816 = vpack.c.bf16 %v785, %v782
      %v817 = vpack.c.bf16 %v793, %v790
      %v818 = vpack.c.bf16 %v801, %v798
      %v819 = vpack.c.bf16 %v809, %v806
      %v828 = vunpack.c.l.b16 %v812
      %v829 = vunpack.c.h.b16 %v812
      %v830 = vunpack.c.l.b16 %v813
      %v831 = vunpack.c.h.b16 %v813
      %v832 = vunpack.c.l.b16 %v814
      %v833 = vunpack.c.h.b16 %v814
      %v834 = vunpack.c.l.b16 %v815
      %v835 = vunpack.c.h.b16 %v815
      %v836 = vunpack.c.l.b16 %v816
      %v837 = vunpack.c.h.b16 %v816
      %v838 = vunpack.c.l.b16 %v817
      %v839 = vunpack.c.h.b16 %v817
      %v840 = vunpack.c.l.b16 %v818
      %v841 = vunpack.c.h.b16 %v818
      %v842 = vunpack.c.l.b16 %v819
      %v843 = vunpack.c.h.b16 %v819
      %v844 = vpack.c.b16 %v828, %v828
      %v845 = vpack.c.b16 %v829, %v829
      %v846 = vpack.c.b16 %v830, %v830
      %v847 = vpack.c.b16 %v831, %v831
      %v848 = vpack.c.b16 %v832, %v832
      %v849 = vpack.c.b16 %v833, %v833
      %v850 = vpack.c.b16 %v834, %v834
      %v851 = vpack.c.b16 %v835, %v835
      %v852 = vpack.c.b16 %v836, %v836
      %v853 = vpack.c.b16 %v837, %v837
      %v854 = vpack.c.b16 %v838, %v838
      %v855 = vpack.c.b16 %v839, %v839
      %v856 = vpack.c.b16 %v840, %v840
      %v857 = vpack.c.b16 %v841, %v841
      %v858 = vpack.c.b16 %v842, %v842
      %v859 = vpack.c.b16 %v843, %v843
      %876 = vst [vmem:[%s313] sm:$0xf] %v844
      %877 = vst [vmem:[%s313 + $0x4] sm:$0xf] %v845
      %878 = vst [vmem:[%s313 + $0x8] sm:$0xf] %v846
      %879 = vst [vmem:[%s313 + $0xc] sm:$0xf] %v847
      %880 = vst [vmem:[%s313 + $0x10] sm:$0xf] %v848
      %881 = vst [vmem:[%s313 + $0x14] sm:$0xf] %v849
      %882 = vst [vmem:[%s313 + $0x18] sm:$0xf] %v850
      %883 = vst [vmem:[%s313 + $0x1c] sm:$0xf] %v851
      %884 = vst [vmem:[%s313 + $0x20] sm:$0xf] %v852
      %885 = vst [vmem:[%s313 + $0x24] sm:$0xf] %v853
      %886 = vst [vmem:[%s313 + $0x28] sm:$0xf] %v854
      %887 = vst [vmem:[%s313 + $0x2c] sm:$0xf] %v855
      %888 = vst [vmem:[%s313 + $0x30] sm:$0xf] %v856
      %889 = vst [vmem:[%s313 + $0x34] sm:$0xf] %v857
      %890 = vst [vmem:[%s313 + $0x38] sm:$0xf] %v858
      %891 = vst [vmem:[%s313 + $0x3c] sm:$0xf] %v859
      %s892 = smul.u32 16, %s23
      %p893 = scmp.lt.s32.totalorder %s22, 1
      %s894 = scalar_select %p893, %s22, 1
      %p895 = scmp.lt.s32.totalorder %s892, 31
      %s896 = scalar_select %p895, %s892, 31
      %s897 = smul.addr %s894, 32
      %s898 = sadd.s32 %s896, %s897
      %s899 = smul.addr %s898, 4
      %s900 = scalar_lea.vmem %s5, %s899
      %s901 = smul.u32 16, %s23
      %p902 = scmp.lt.s32.totalorder %s22, 1
      %s903 = scalar_select %p902, %s22, 1
      %p904 = scmp.lt.s32.totalorder %s901, 31
      %s905 = scalar_select %p904, %s901, 31
      %s906 = smul.addr %s903, 32
      %s907 = sadd.s32 %s905, %s906
      %s908 = smul.addr %s907, 4
      %s909 = scalar_lea.vmem %s6, %s908
      // Predicated region
      $region41: #{baseoc_context_forward.2} parent=39 // pred_check
        %p910 = pneg %p162
      $region42: #{baseoc_context_forward.2} parent=39 // pred_check_branch
        %912 = sbr.rel (%p910) target = $region44
      $region43: #{baseoc_context_forward.2} parent=39 // pred_region
        %s913 = smul.u32 16, %s23
      $region44: #{baseoc_context_forward.2} parent=39 // pred_fallthru
        _
      // Predicated region
      $region45: #{baseoc_context_forward.2} parent=39 // pred_check
        %p914 = pneg %p190
      $region46: #{baseoc_context_forward.2} parent=39 // pred_check_branch
        %916 = sbr.rel (%p914) target = $region48
      $region47: #{baseoc_context_forward.2} parent=39 // pred_region
        %s917 = smul.u32 16, %s23
      $region48: #{baseoc_context_forward.2} parent=39 // pred_fallthru
        _
    $region40: #{baseoc_context_forward.2} parent=5 // pred_fallthru
      _
    %p918 = scmp.le.s32.totalorder 2, %s13
    // Predicated region
    $region49: #{baseoc_context_forward.2} parent=5 // pred_check
      %p919 = pneg %p918
    $region50: #{baseoc_context_forward.2} parent=5 // pred_check_branch
      %921 = sbr.rel (%p919) target = $region52
    $region51: #{baseoc_context_forward.2} parent=5 // pred_region
      %s922 = ssub.s32 %s13, 2
      // Predicated region
      $region53: #{baseoc_context_forward.2} parent=51 // pred_check
        %p923 = pneg %p168
      $region54: #{baseoc_context_forward.2} parent=51 // pred_check_branch
        %925 = sbr.rel (%p923) target = $region56
      $region55: #{baseoc_context_forward.2} parent=51 // pred_region
        %s926 = smul.u32 16, %s25
        %p927 = scmp.lt.s32.totalorder %s24, 1
        %s928 = scalar_select %p927, %s24, 1
        %p929 = scmp.lt.s32.totalorder %s926, 31
        %s930 = scalar_select %p929, %s926, 31
        %s931 = smul.addr %s928, 32
        %s932 = sadd.s32 %s930, %s931
        %s933 = smul.addr %s932, 4
        %s934 = scalar_lea.vmem %s5, %s933
      $region56: #{baseoc_context_forward.2} parent=51 // pred_fallthru
        _
      // Predicated region
      $region57: #{baseoc_context_forward.2} parent=51 // pred_check
        %p935 = pneg %p196
      $region58: #{baseoc_context_forward.2} parent=51 // pred_check_branch
        %937 = sbr.rel (%p935) target = $region60
      $region59: #{baseoc_context_forward.2} parent=51 // pred_region
        %s938 = smul.u32 16, %s25
        %p939 = scmp.lt.s32.totalorder %s24, 1
        %s940 = scalar_select %p939, %s24, 1
        %p941 = scmp.lt.s32.totalorder %s938, 31
        %s942 = scalar_select %p941, %s938, 31
        %s943 = smul.addr %s940, 32
        %s944 = sadd.s32 %s942, %s943
        %s945 = smul.addr %s944, 4
        %s946 = scalar_lea.vmem %s6, %s945
      $region60: #{baseoc_context_forward.2} parent=51 // pred_fallthru
        _
    $region52: #{baseoc_context_forward.2} parent=5 // pred_fallthru
      _
  $region6: #{baseoc_context_forward.2} parent=0 // loop_footer
    %s17 = sadd.s32 1, %s13
  $region7: #{baseoc_context_forward.2} parent=0 // loop_footer_branch
    %12 = sbr.rel target = $region3
  $region8: #{baseoc_context_forward.2} parent=0 // loop_exit
    _

// kernel: baseoc_context_forward.3
$region0: #{baseoc_context_forward.3}
  #allocation0 [shape = 'u32[]', space=smem, size = 0x4, offset = 0x4, fixed_abs, tag = 'smem constant byte address 0x4 - core index']
  #allocation1 [shape = 'u32[144,128]{1,0:T(1,128)}', space=vmem, size = 0x12000, scoped, tag = 'internal scratch']
  #allocation2 [shape = 'f32[128,1]{1,0:T(8,128)}', space=vmem, size = 0x10000, scoped, tag = 'scratch operand']
  #allocation3 [shape = 'f32[128,1]{1,0:T(8,128)}', space=vmem, size = 0x10000, scoped, tag = 'scratch operand']
  #allocation4 [shape = 'f32[128,128]{1,0:T(8,128)}', space=vmem, size = 0x10000, scoped, tag = 'scratch operand']
  %s0 = inlined_call_operand.vmem [shape: bf16[2,256,128], index: 0, kind: input, shape index: {}, may-alias: {0,1}]
  %s1 = inlined_call_operand.vmem [shape: bf16[2,256,128], index: 1, kind: input, shape index: {}, may-alias: {0,1}]
  %s2 = inlined_call_operand.vmem [shape: bf16[2,256,128], index: 2, kind: input, shape index: {}]
  %s3 = inlined_call_operand.vmem [shape: bf16[128,128], index: 3, kind: input, shape index: {}]
  %s4 = inlined_call_operand.vmem [shape: f32[1,128], index: 4, kind: input, shape index: {}]
  %s5 = inlined_call_operand.hbm [shape: f32[2,256,128], index: 5, kind: output, shape index: {}]
  %s6 = sld [smem:[#allocation0]]
  $region61: #{baseoc_context_forward.3} parent=0
    _
  %s8 = ssub.s32 1, %s6
  %s9 = scalar_select 0, %s8, %s6
  $region1: #{baseoc_context_forward.3} parent=0
    #allocation5 [shape = 'u8[131072]{0}', space=vmem, size = 0x20000, scoped, tag = 'output window, operand 0']
    #allocation6 [shape = 's32[2]{0}', space=sflag, size = 0x8, scoped, tag = 'scoped memory for baseoc_context_forward.3']
    %10 = vsyncpa [#allocation6], 0
    %s11 = scalar_lea.sflag [#allocation6], 1
    %12 = vsyncpa %s11, 0
    loop: start=0, step=1, limit=10
    $region2: #{baseoc_context_forward.3} parent=1 // loop_pre_header
      _
    $region3: #{baseoc_context_forward.3} parent=1 // loop_header
      %s14 = sphi 0, %s18
      %p15 = scmp.ge.s32.totalorder %s14, 10
      %s21 = sphi 0, %s40
      %s22 = sphi 0, %s36
      %s23 = sphi 0, %s32
      %s24 = sphi 0, %s21
      %s25 = sphi 0, %s22
      %s26 = sphi 0, %s23
      %s27 = sphi 0, %s24
      %s28 = sphi 0, %s25
      %s29 = sphi 0, %s26
      %s45 = sphi 0, %s47
      %s48 = sphi 0, %s45
      %s49 = sphi 0, %s48
      %s65 = sphi 0, %s49
      %s73 = sphi 0, %s75
      %s76 = sphi 0, %s73
      %s77 = sphi 0, %s76
      %s93 = sphi 0, %s77
      %s101 = sphi 0, %s103
      %s104 = sphi 0, %s101
      %s105 = sphi 0, %s104
      %s121 = sphi 0, %s105
      %s125 = sphi 0, %s125
      %s127 = sphi 0, %s125
      %s128 = sphi 0, %s127
      %s142 = sphi 0, %s128
      %s146 = sphi 0, %s146
      %s148 = sphi 0, %s146
      %s149 = sphi 0, %s148
      %s163 = sphi 0, %s149
      %s171 = sphi 0, %s173
      %s174 = sphi 0, %s171
      %s175 = sphi 0, %s174
      %s191 = sphi 0, %s175
    $region4: #{baseoc_context_forward.3} parent=1 // loop_header_branch
      %17 = sbr.rel (%p15) target = $region8
    $region5: #{baseoc_context_forward.3} parent=1 // loop_body
      %s19 = ssub.s32 %s14, 1
      %s20 = ssub.s32 %s14, 2
      %s30 = sadd.s32 1, %s23
      %p31 = scmp.ge.s32.totalorder %s30, 2
      %s32 = scalar_select %p31, 0, %s30
      %s33 = sadd.s32 1, %s22
      %s34 = scalar_select %p31, %s33, %s22
      %p35 = scmp.ge.s32.totalorder %s34, 2
      %s36 = scalar_select %p35, 0, %s34
      %s37 = sadd.s32 1, %s21
      %s38 = scalar_select %p35, %s37, %s21
      %p39 = scmp.ge.s32.totalorder %s38, 2
      %s40 = scalar_select %p39, 0, %s38
      %s41 = ssub.s32 %s21, %s40
      %s42 = ssub.s32 %s22, %s36
      %s43 = sor.u32 %s41, %s42
      %p44 = scmp.eq.s32.totalorder %s43, 0
      %s46 = sadd.s32 %s45, 1
      %s47 = scalar_select %p44, %s45, %s46
      %p50 = pneg %p44
      %p51 = scmp.eq.s32.totalorder %s14, 7
      %p52 = por %p50, %p51
      %p53 = scmp.ne.s32.totalorder %s45, %s48
      %p54 = scmp.eq.s32.totalorder %s14, 0
      %p55 = por %p53, %p54
      %p56 = scmp.ne.s32.totalorder %s45, %s48
      %p57 = scmp.eq.s32.totalorder %s19, 7
      %p58 = por %p56, %p57
      %p59 = scmp.ne.s32.totalorder %s48, %s49
      %p60 = scmp.eq.s32.totalorder %s19, 0
      %p61 = por %p59, %p60
      %p62 = scmp.ne.s32.totalorder %s48, %s49
      %p63 = scmp.eq.s32.totalorder %s20, 7
      %p64 = por %p62, %p63
      %p66 = scmp.ne.s32.totalorder %s49, %s65
      %p67 = scmp.eq.s32.totalorder %s20, 0
      %p68 = por %p66, %p67
      %s69 = ssub.s32 %s21, %s40
      %s70 = ssub.s32 %s23, %s32
      %s71 = sor.u32 %s69, %s70
      %p72 = scmp.eq.s32.totalorder %s71, 0
      %s74 = sadd.s32 %s73, 1
      %s75 = scalar_select %p72, %s73, %s74
      %p78 = pneg %p72
      %p79 = scmp.eq.s32.totalorder %s14, 7
      %p80 = por %p78, %p79
      %p81 = scmp.ne.s32.totalorder %s73, %s76
      %p82 = scmp.eq.s32.totalorder %s14, 0
      %p83 = por %p81, %p82
      %p84 = scmp.ne.s32.totalorder %s73, %s76
      %p85 = scmp.eq.s32.totalorder %s19, 7
      %p86 = por %p84, %p85
      %p87 = scmp.ne.s32.totalorder %s76, %s77
      %p88 = scmp.eq.s32.totalorder %s19, 0
      %p89 = por %p87, %p88
      %p90 = scmp.ne.s32.totalorder %s76, %s77
      %p91 = scmp.eq.s32.totalorder %s20, 7
      %p92 = por %p90, %p91
      %p94 = scmp.ne.s32.totalorder %s77, %s93
      %p95 = scmp.eq.s32.totalorder %s20, 0
      %p96 = por %p94, %p95
      %s97 = ssub.s32 %s21, %s40
      %s98 = ssub.s32 %s23, %s32
      %s99 = sor.u32 %s97, %s98
      %p100 = scmp.eq.s32.totalorder %s99, 0
      %s102 = sadd.s32 %s101, 1
      %s103 = scalar_select %p100, %s101, %s102
      %p106 = pneg %p100
      %p107 = scmp.eq.s32.totalorder %s14, 7
      %p108 = por %p106, %p107
      %p109 = scmp.ne.s32.totalorder %s101, %s104
      %p110 = scmp.eq.s32.totalorder %s14, 0
      %p111 = por %p109, %p110
      %p112 = scmp.ne.s32.totalorder %s101, %s104
      %p113 = scmp.eq.s32.totalorder %s19, 7
      %p114 = por %p112, %p113
      %p115 = scmp.ne.s32.totalorder %s104, %s105
      %p116 = scmp.eq.s32.totalorder %s19, 0
      %p117 = por %p115, %p116
      %p118 = scmp.ne.s32.totalorder %s104, %s105
      %p119 = scmp.eq.s32.totalorder %s20, 7
      %p120 = por %p118, %p119
      %p122 = scmp.ne.s32.totalorder %s105, %s121
      %p123 = scmp.eq.s32.totalorder %s20, 0
      %p124 = por %p122, %p123
      %s126 = sadd.s32 %s125, 1
      %p129 = scmp.eq.s32.totalorder %s14, 7
      %p130 = scmp.ne.s32.totalorder %s125, %s127
      %p131 = scmp.eq.s32.totalorder %s14, 0
      %p132 = por %p130, %p131
      %p133 = scmp.ne.s32.totalorder %s125, %s127
      %p134 = scmp.eq.s32.totalorder %s19, 7
      %p135 = por %p133, %p134
      %p136 = scmp.ne.s32.totalorder %s127, %s128
      %p137 = scmp.eq.s32.totalorder %s19, 0
      %p138 = por %p136, %p137
      %p139 = scmp.ne.s32.totalorder %s127, %s128
      %p140 = scmp.eq.s32.totalorder %s20, 7
      %p141 = por %p139, %p140
      %p143 = scmp.ne.s32.totalorder %s128, %s142
      %p144 = scmp.eq.s32.totalorder %s20, 0
      %p145 = por %p143, %p144
      %s147 = sadd.s32 %s146, 1
      %p150 = scmp.eq.s32.totalorder %s14, 7
      %p151 = scmp.ne.s32.totalorder %s146, %s148
      %p152 = scmp.eq.s32.totalorder %s14, 0
      %p153 = por %p151, %p152
      %p154 = scmp.ne.s32.totalorder %s146, %s148
      %p155 = scmp.eq.s32.totalorder %s19, 7
      %p156 = por %p154, %p155
      %p157 = scmp.ne.s32.totalorder %s148, %s149
      %p158 = scmp.eq.s32.totalorder %s19, 0
      %p159 = por %p157, %p158
      %p160 = scmp.ne.s32.totalorder %s148, %s149
      %p161 = scmp.eq.s32.totalorder %s20, 7
      %p162 = por %p160, %p161
      %p164 = scmp.ne.s32.totalorder %s149, %s163
      %p165 = scmp.eq.s32.totalorder %s20, 0
      %p166 = por %p164, %p165
      %s167 = ssub.s32 %s21, %s40
      %s168 = ssub.s32 %s22, %s36
      %s169 = sor.u32 %s167, %s168
      %p170 = scmp.eq.s32.totalorder %s169, 0
      %s172 = sadd.s32 %s171, 1
      %s173 = scalar_select %p170, %s171, %s172
      %p176 = pneg %p170
      %p177 = scmp.eq.s32.totalorder %s14, 7
      %p178 = por %p176, %p177
      %p179 = scmp.ne.s32.totalorder %s171, %s174
      %p180 = scmp.eq.s32.totalorder %s14, 0
      %p181 = por %p179, %p180
      %p182 = scmp.ne.s32.totalorder %s171, %s174
      %p183 = scmp.eq.s32.totalorder %s19, 7
      %p184 = por %p182, %p183
      %p185 = scmp.ne.s32.totalorder %s174, %s175
      %p186 = scmp.eq.s32.totalorder %s19, 0
      %p187 = por %p185, %p186
      %p188 = scmp.ne.s32.totalorder %s174, %s175
      %p189 = scmp.eq.s32.totalorder %s20, 7
      %p190 = por %p188, %p189
      %p192 = scmp.ne.s32.totalorder %s175, %s191
      %p193 = scmp.eq.s32.totalorder %s20, 0
      %p194 = por %p192, %p193
      %p195 = scmp.le.s32.totalorder 1, %s14
      %p196 = scmp.lt.s32.totalorder %s14, 9
      %p197 = pnand %p195, %p196
      %p198 = pneg %p197
      // Predicated region
      $region9: #{baseoc_context_forward.3} parent=5 // pred_check
        _
      $region10: #{baseoc_context_forward.3} parent=5 // pred_check_branch
        %200 = sbr.rel (%p197) target = $region12
      $region11: #{baseoc_context_forward.3} parent=5 // pred_region
        %s201 = ssub.s32 %s14, 1
        // Predicated region
        $region13: #{baseoc_context_forward.3} parent=11 // pred_check
          %p202 = pneg %p138
        $region14: #{baseoc_context_forward.3} parent=11 // pred_check_branch
          %204 = sbr.rel (%p202) target = $region16
        $region15: #{baseoc_context_forward.3} parent=11 // pred_region
          _
        $region16: #{baseoc_context_forward.3} parent=11 // pred_fallthru
          _
        // Predicated region
        $region17: #{baseoc_context_forward.3} parent=11 // pred_check
          %p205 = pneg %p159
        $region18: #{baseoc_context_forward.3} parent=11 // pred_check_branch
          %207 = sbr.rel (%p205) target = $region20
        $region19: #{baseoc_context_forward.3} parent=11 // pred_region
          _
        $region20: #{baseoc_context_forward.3} parent=11 // pred_fallthru
          _
      $region12: #{baseoc_context_forward.3} parent=5 // pred_fallthru
        _
      %p208 = scmp.lt.s32.totalorder %s14, 8
      // Predicated region
      $region21: #{baseoc_context_forward.3} parent=5 // pred_check
        %p209 = pneg %p208
      $region22: #{baseoc_context_forward.3} parent=5 // pred_check_branch
        %211 = sbr.rel (%p209) target = $region24
      $region23: #{baseoc_context_forward.3} parent=5 // pred_region
        // Predicated region
        $region25: #{baseoc_context_forward.3} parent=23 // pred_check
          %p212 = pneg %p55
        $region26: #{baseoc_context_forward.3} parent=23 // pred_check_branch
          %214 = sbr.rel (%p212) target = $region28
        $region27: #{baseoc_context_forward.3} parent=23 // pred_region
          %s215 = smul.u32 16, %s22
          %p216 = scmp.lt.s32.totalorder %s21, 1
          %s217 = scalar_select %p216, %s21, 1
          %p218 = scmp.lt.s32.totalorder %s215, 31
          %s219 = scalar_select %p218, %s215, 31
          %s220 = smul.addr %s217, 32
          %s221 = sadd.s32 %s219, %s220
          %s222 = smul.addr %s221, 4
          %s223 = scalar_lea.vmem %s0, %s222
          %s224 = smul.u32 16, %s22
        $region28: #{baseoc_context_forward.3} parent=23 // pred_fallthru
          _
        // Predicated region
        $region29: #{baseoc_context_forward.3} parent=23 // pred_check
          %p225 = pneg %p83
        $region30: #{baseoc_context_forward.3} parent=23 // pred_check_branch
          %227 = sbr.rel (%p225) target = $region32
        $region31: #{baseoc_context_forward.3} parent=23 // pred_region
          %s228 = smul.u32 16, %s23
          %p229 = scmp.lt.s32.totalorder %s21, 1
          %s230 = scalar_select %p229, %s21, 1
          %p231 = scmp.lt.s32.totalorder %s228, 31
          %s232 = scalar_select %p231, %s228, 31
          %s233 = smul.addr %s230, 32
          %s234 = sadd.s32 %s232, %s233
          %s235 = smul.addr %s234, 4
          %s236 = scalar_lea.vmem %s1, %s235
          %s237 = smul.u32 16, %s23
        $region32: #{baseoc_context_forward.3} parent=23 // pred_fallthru
          _
        // Predicated region
        $region33: #{baseoc_context_forward.3} parent=23 // pred_check
          %p238 = pneg %p111
        $region34: #{baseoc_context_forward.3} parent=23 // pred_check_branch
          %240 = sbr.rel (%p238) target = $region36
        $region35: #{baseoc_context_forward.3} parent=23 // pred_region
          %s241 = smul.u32 16, %s23
          %p242 = scmp.lt.s32.totalorder %s21, 1
          %s243 = scalar_select %p242, %s21, 1
          %p244 = scmp.lt.s32.totalorder %s241, 31
          %s245 = scalar_select %p244, %s241, 31
          %s246 = smul.addr %s243, 32
          %s247 = sadd.s32 %s245, %s246
          %s248 = smul.addr %s247, 4
          %s249 = scalar_lea.vmem %s2, %s248
          %s250 = smul.u32 16, %s23
        $region36: #{baseoc_context_forward.3} parent=23 // pred_fallthru
          _
      $region24: #{baseoc_context_forward.3} parent=5 // pred_fallthru
        _
      %p251 = scmp.le.s32.totalorder 1, %s14
      %p252 = scmp.lt.s32.totalorder %s14, 9
      %p253 = pnand %p251, %p252
      %p254 = pneg %p253
      // Predicated region
      $region37: #{baseoc_context_forward.3} parent=5 // pred_check
        _
      $region38: #{baseoc_context_forward.3} parent=5 // pred_check_branch
        %256 = sbr.rel (%p253) target = $region40
      $region39: #{baseoc_context_forward.3} parent=5 // pred_region
        %s257 = ssub.s32 %s14, 1
        %s258 = smul.u32 16, %s25
        %p259 = scmp.lt.s32.totalorder %s24, 1
        %s260 = scalar_select %p259, %s24, 1
        %p261 = scmp.lt.s32.totalorder %s258, 31
        %s262 = scalar_select %p261, %s258, 31
        %s263 = smul.addr %s260, 32
        %s264 = sadd.s32 %s262, %s263
        %s265 = smul.addr %s264, 4
        %s266 = scalar_lea.vmem %s0, %s265
        %p267 = pneg %p61
        %p268 = pneg %p58
        %s269 = smul.u32 16, %s26
        %p270 = scmp.lt.s32.totalorder %s24, 1
        %s271 = scalar_select %p270, %s24, 1
        %p272 = scmp.lt.s32.totalorder %s269, 31
        %s273 = scalar_select %p272, %s269, 31
        %s274 = smul.addr %s271, 32
        %s275 = sadd.s32 %s273, %s274
        %s276 = smul.addr %s275, 4
        %s277 = scalar_lea.vmem %s1, %s276
        %p278 = pneg %p89
        %p279 = pneg %p86
        %s280 = smul.u32 16, %s26
        %p281 = scmp.lt.s32.totalorder %s24, 1
        %s282 = scalar_select %p281, %s24, 1
        %p283 = scmp.lt.s32.totalorder %s280, 31
        %s284 = scalar_select %p283, %s280, 31
        %s285 = smul.addr %s282, 32
        %s286 = sadd.s32 %s284, %s285
        %s287 = smul.addr %s286, 4
        %s288 = scalar_lea.vmem %s2, %s287
        %p289 = pneg %p117
        %p290 = pneg %p114
        %p291 = pneg %p138
        %p292 = pneg %p135
        %p293 = pneg %p159
        %p294 = pneg %p156
        %p295 = pneg %p187
        %p296 = pneg %p184
        %s297 = sand.u32 %s174, 1
        %s298 = scalar_lea.sflag [#allocation6], %s297
        %s299 = sand.u32 %s174, 1
        %s300 = smul.addr %s299, 128
        %s301 = scalar_lea.vmem [#allocation5], %s300
        %s302 = smul.u32 16, %s25
        %p303 = scmp.lt.s32.totalorder %s24, 1
        %s304 = scalar_select %p303, %s24, 1
        %p305 = scmp.lt.s32.totalorder %s302, 31
        %s306 = scalar_select %p305, %s302, 31
        %s307 = smul.addr %s304, 32
        %s308 = sadd.s32 %s306, %s307
        %s309 = smul.addr %s308, 4
        %s310 = scalar_lea.vmem %s0, %s309
        %s311 = smul.u32 16, %s25
        %s312 = smul.u32 16, %s26
        %p313 = scmp.lt.s32.totalorder %s24, 1
        %s314 = scalar_select %p313, %s24, 1
        %p315 = scmp.lt.s32.totalorder %s312, 31
        %s316 = scalar_select %p315, %s312, 31
        %s317 = smul.addr %s314, 32
        %s318 = sadd.s32 %s316, %s317
        %s319 = smul.addr %s318, 4
        %s320 = scalar_lea.vmem %s1, %s319
        %s321 = smul.u32 16, %s26
        %s322 = smul.u32 16, %s26
        %p323 = scmp.lt.s32.totalorder %s24, 1
        %s324 = scalar_select %p323, %s24, 1
        %p325 = scmp.lt.s32.totalorder %s322, 31
        %s326 = scalar_select %p325, %s322, 31
        %s327 = smul.addr %s324, 32
        %s328 = sadd.s32 %s326, %s327
        %s329 = smul.addr %s328, 4
        %s330 = scalar_lea.vmem %s2, %s329
        %s331 = smul.u32 16, %s26
        %s332 = smul.u32 16, %s25
        %p334 = scmp.eq.s32.totalorder %s26, 0
        // Predicated region
        $region41: #{baseoc_context_forward.3} parent=39 // pred_check
          %p335 = pneg %p334
        $region42: #{baseoc_context_forward.3} parent=39 // pred_check_branch
          %337 = sbr.rel (%p335) target = $region44
        $region43: #{baseoc_context_forward.3} parent=39 // pred_region
          %vm338 = vcmask 7168
          %339 = vst.msk [vmem:[#allocation2] sm:$0xff] %vm338, -inf
          %340 = vst.msk [vmem:[#allocation2 + $0x8] sm:$0xff] %vm338, -inf
          %341 = vst.msk [vmem:[#allocation2 + $0x10] sm:$0xff] %vm338, -inf
          %342 = vst.msk [vmem:[#allocation2 + $0x18] sm:$0xff] %vm338, -inf
          %343 = vst.msk [vmem:[#allocation2 + $0x20] sm:$0xff] %vm338, -inf
          %344 = vst.msk [vmem:[#allocation2 + $0x28] sm:$0xff] %vm338, -inf
          %345 = vst.msk [vmem:[#allocation2 + $0x30] sm:$0xff] %vm338, -inf
          %346 = vst.msk [vmem:[#allocation2 + $0x38] sm:$0xff] %vm338, -inf
          %347 = vst.msk [vmem:[#allocation2 + $0x40] sm:$0xff] %vm338, -inf
          %348 = vst.msk [vmem:[#allocation2 + $0x48] sm:$0xff] %vm338, -inf
          %349 = vst.msk [vmem:[#allocation2 + $0x50] sm:$0xff] %vm338, -inf
          %350 = vst.msk [vmem:[#allocation2 + $0x58] sm:$0xff] %vm338, -inf
          %351 = vst.msk [vmem:[#allocation2 + $0x60] sm:$0xff] %vm338, -inf
          %352 = vst.msk [vmem:[#allocation2 + $0x68] sm:$0xff] %vm338, -inf
          %353 = vst.msk [vmem:[#allocation2 + $0x70] sm:$0xff] %vm338, -inf
          %354 = vst.msk [vmem:[#allocation2 + $0x78] sm:$0xff] %vm338, -inf
          %355 = vst.msk [vmem:[#allocation3] sm:$0xff] %vm338, 0.0
          %356 = vst.msk [vmem:[#allocation3 + $0x8] sm:$0xff] %vm338, 0.0
          %357 = vst.msk [vmem:[#allocation3 + $0x10] sm:$0xff] %vm338, 0.0
          %358 = vst.msk [vmem:[#allocation3 + $0x18] sm:$0xff] %vm338, 0.0
          %359 = vst.msk [vmem:[#allocation3 + $0x20] sm:$0xff] %vm338, 0.0
          %360 = vst.msk [vmem:[#allocation3 + $0x28] sm:$0xff] %vm338, 0.0
          %361 = vst.msk [vmem:[#allocation3 + $0x30] sm:$0xff] %vm338, 0.0
          %362 = vst.msk [vmem:[#allocation3 + $0x38] sm:$0xff] %vm338, 0.0
          %363 = vst.msk [vmem:[#allocation3 + $0x40] sm:$0xff] %vm338, 0.0
          %364 = vst.msk [vmem:[#allocation3 + $0x48] sm:$0xff] %vm338, 0.0
          %365 = vst.msk [vmem:[#allocation3 + $0x50] sm:$0xff] %vm338, 0.0
          %366 = vst.msk [vmem:[#allocation3 + $0x58] sm:$0xff] %vm338, 0.0
          %367 = vst.msk [vmem:[#allocation3 + $0x60] sm:$0xff] %vm338, 0.0
          %368 = vst.msk [vmem:[#allocation3 + $0x68] sm:$0xff] %vm338, 0.0
          %369 = vst.msk [vmem:[#allocation3 + $0x70] sm:$0xff] %vm338, 0.0
          %370 = vst.msk [vmem:[#allocation3 + $0x78] sm:$0xff] %vm338, 0.0
          %371 = vst [vmem:[#allocation4] sm:$0xff] 0.0
          %372 = vst [vmem:[#allocation4 + $0x8] sm:$0xff] 0.0
          %373 = vst [vmem:[#allocation4 + $0x10] sm:$0xff] 0.0
          %374 = vst [vmem:[#allocation4 + $0x18] sm:$0xff] 0.0
          %375 = vst [vmem:[#allocation4 + $0x20] sm:$0xff] 0.0
          %376 = vst [vmem:[#allocation4 + $0x28] sm:$0xff] 0.0
          %377 = vst [vmem:[#allocation4 + $0x30] sm:$0xff] 0.0
          %378 = vst [vmem:[#allocation4 + $0x38] sm:$0xff] 0.0
          %379 = vst [vmem:[#allocation4 + $0x40] sm:$0xff] 0.0
          %380 = vst [vmem:[#allocation4 + $0x48] sm:$0xff] 0.0
          %381 = vst [vmem:[#allocation4 + $0x50] sm:$0xff] 0.0
          %382 = vst [vmem:[#allocation4 + $0x58] sm:$0xff] 0.0
          %383 = vst [vmem:[#allocation4 + $0x60] sm:$0xff] 0.0
          %384 = vst [vmem:[#allocation4 + $0x68] sm:$0xff] 0.0
          %385 = vst [vmem:[#allocation4 + $0x70] sm:$0xff] 0.0
          %386 = vst [vmem:[#allocation4 + $0x78] sm:$0xff] 0.0
        $region44: #{baseoc_context_forward.3} parent=39 // pred_fallthru
          _
        %v387 = vld [vmem:[%s310] sm:$0xf]
        %v388 = vld [vmem:[%s310 + $0x4] sm:$0xf]
        %v389 = vld [vmem:[%s310 + $0x8] sm:$0xf]
        %v390 = vld [vmem:[%s310 + $0xc] sm:$0xf]
        %v391 = vld [vmem:[%s310 + $0x10] sm:$0xf]
        %v392 = vld [vmem:[%s310 + $0x14] sm:$0xf]
        %v393 = vld [vmem:[%s310 + $0x18] sm:$0xf]
        %v394 = vld [vmem:[%s310 + $0x1c] sm:$0xf]
        %v395 = vld [vmem:[%s310 + $0x20] sm:$0xf]
        %v396 = vld [vmem:[%s310 + $0x24] sm:$0xf]
        %v397 = vld [vmem:[%s310 + $0x28] sm:$0xf]
        %v398 = vld [vmem:[%s310 + $0x2c] sm:$0xf]
        %v399 = vld [vmem:[%s310 + $0x30] sm:$0xf]
        %v400 = vld [vmem:[%s310 + $0x34] sm:$0xf]
        %v401 = vld [vmem:[%s310 + $0x38] sm:$0xf]
        %v402 = vld [vmem:[%s310 + $0x3c] sm:$0xf]
        %v403 = vld [vmem:[%s320] sm:$0xf]
        %v404 = vld [vmem:[%s320 + $0x4] sm:$0xf]
        %v405 = vld [vmem:[%s320 + $0x8] sm:$0xf]
        %v406 = vld [vmem:[%s320 + $0xc] sm:$0xf]
        %v407 = vld [vmem:[%s320 + $0x10] sm:$0xf]
        %v408 = vld [vmem:[%s320 + $0x14] sm:$0xf]
        %v409 = vld [vmem:[%s320 + $0x18] sm:$0xf]
        %v410 = vld [vmem:[%s320 + $0x1c] sm:$0xf]
        %v411 = vld [vmem:[%s320 + $0x20] sm:$0xf]
        %v412 = vld [vmem:[%s320 + $0x24] sm:$0xf]
        %v413 = vld [vmem:[%s320 + $0x28] sm:$0xf]
        %v414 = vld [vmem:[%s320 + $0x2c] sm:$0xf]
        %v415 = vld [vmem:[%s320 + $0x30] sm:$0xf]
        %v416 = vld [vmem:[%s320 + $0x34] sm:$0xf]
        %v417 = vld [vmem:[%s320 + $0x38] sm:$0xf]
        %v418 = vld [vmem:[%s320 + $0x3c] sm:$0xf]
        %v435 = vunpack.c.l.b16 %v387
        %v436 = vunpack.c.l.b16 %v388
        %v437 = vunpack.c.l.b16 %v389
        %v438 = vunpack.c.l.b16 %v390
        %v439 = vunpack.c.l.b16 %v391
        %v440 = vunpack.c.l.b16 %v392
        %v441 = vunpack.c.l.b16 %v393
        %v442 = vunpack.c.l.b16 %v394
        %v443 = vunpack.c.l.b16 %v395
        %v444 = vunpack.c.l.b16 %v396
        %v445 = vunpack.c.l.b16 %v397
        %v446 = vunpack.c.l.b16 %v398
        %v447 = vunpack.c.l.b16 %v399
        %v448 = vunpack.c.l.b16 %v400
        %v449 = vunpack.c.l.b16 %v401
        %v450 = vunpack.c.l.b16 %v402
        %v451 = vpack.c.b16 %v436, %v435
        %v452 = vpack.c.b16 %v438, %v437
        %v453 = vpack.c.b16 %v440, %v439
        %v454 = vpack.c.b16 %v442, %v441
        %v455 = vpack.c.b16 %v444, %v443
        %v456 = vpack.c.b16 %v446, %v445
        %v457 = vpack.c.b16 %v448, %v447
        %v458 = vpack.c.b16 %v450, %v449
        %v483 = vunpack.c.l.b16 %v403
        %v484 = vunpack.c.l.b16 %v404
        %v485 = vunpack.c.l.b16 %v405
        %v486 = vunpack.c.l.b16 %v406
        %v487 = vunpack.c.l.b16 %v407
        %v488 = vunpack.c.l.b16 %v408
        %v489 = vunpack.c.l.b16 %v409
        %v490 = vunpack.c.l.b16 %v410
        %v491 = vunpack.c.l.b16 %v411
        %v492 = vunpack.c.l.b16 %v412
        %v493 = vunpack.c.l.b16 %v413
        %v494 = vunpack.c.l.b16 %v414
        %v495 = vunpack.c.l.b16 %v415
        %v496 = vunpack.c.l.b16 %v416
        %v497 = vunpack.c.l.b16 %v417
        %v498 = vunpack.c.l.b16 %v418
        %v499 = vpack.c.b16 %v484, %v483
        %v500 = vpack.c.b16 %v486, %v485
        %v501 = vpack.c.b16 %v488, %v487
        %v502 = vpack.c.b16 %v490, %v489
        %v503 = vpack.c.b16 %v492, %v491
        %v504 = vpack.c.b16 %v494, %v493
        %v505 = vpack.c.b16 %v496, %v495
        %v506 = vpack.c.b16 %v498, %v497
        %515 = vmatprep.subr.bf16.mxu0 0
        %516 = vmatpush1.bf16.xpose.msra.mxu0 %v506
        %517 = vmatprep.subr.bf16.mxu0 0
        %518 = vmatpush1.bf16.xpose.msra.mxu0 %v505
        %519 = vmatprep.subr.bf16.mxu0 0
        %520 = vmatpush1.bf16.xpose.msra.mxu0 %v504
        %521 = vmatprep.subr.bf16.mxu0 0
        %522 = vmatpush1.bf16.xpose.msra.mxu0 %v503
        %523 = vmatprep.subr.bf16.mxu0 0
        %524 = vmatpush1.bf16.xpose.msra.mxu0 %v502
        %525 = vmatprep.subr.bf16.mxu0 0
        %526 = vmatpush1.bf16.xpose.msra.mxu0 %v501
        %527 = vmatprep.subr.bf16.mxu0 0
        %528 = vmatpush1.bf16.xpose.msra.mxu0 %v500
        %529 = vmatprep.subr.bf16.mxu0 0
        %530 = vmatpush1.bf16.xpose.msra.mxu0 %v499
        %531 = vmatprep.subr.bf16.mxu0 0
        %532 = vmatpush2.bf16.xpose.msra.mxu0 0
        %533 = vmatprep.subr.bf16.mxu0 0
        %534 = vmatpush2.bf16.xpose.msra.mxu0 0
        %535 = vmatprep.subr.bf16.mxu0 0
        %536 = vmatpush2.bf16.xpose.msra.mxu0 0
        %537 = vmatprep.subr.bf16.mxu0 0
        %538 = vmatpush2.bf16.xpose.msra.mxu0 0
        %539 = vmatprep.subr.bf16.mxu0 0
        %540 = vmatpush2.bf16.xpose.msra.mxu0 0
        %541 = vmatprep.subr.bf16.mxu0 0
        %542 = vmatpush2.bf16.xpose.msra.mxu0 0
        %543 = vmatprep.subr.bf16.mxu0 0
        %544 = vmatpush2.bf16.xpose.msra.mxu0 0
        %545 = vmatprep.subr.bf16.mxu0 0
        %546 = vmatpush2.bf16.xpose.msra.mxu0 0
        %547 = vmatprep.mubr.bf16.mxu0 0
        %548 = vmatmul.mubr.bf16.gmra.mxu0 %v451
        %v549 = vpop.f32.mrf.mxu0
        %v550 = vadd.f32 0.0, %v549
        %v551 = vpop.f32.mrf.mxu0
        %v552 = vpop.f32.mrf.mxu0
        %v553 = vadd.f32 0.0, %v552
        %v554 = vpop.f32.mrf.mxu0
        %555 = vmatprep.mubr.bf16.mxu0 0
        %556 = vmatmul.mubr.bf16.gmra.mxu0 %v452
        %v557 = vpop.f32.mrf.mxu0
        %v558 = vadd.f32 0.0, %v557
        %v559 = vpop.f32.mrf.mxu0
        %v560 = vpop.f32.mrf.mxu0
        %v561 = vadd.f32 0.0, %v560
        %v562 = vpop.f32.mrf.mxu0
        %563 = vmatprep.mubr.bf16.mxu0 0
        %564 = vmatmul.mubr.bf16.gmra.mxu0 %v453
        %v565 = vpop.f32.mrf.mxu0
        %v566 = vadd.f32 0.0, %v565
        %v567 = vpop.f32.mrf.mxu0
        %v568 = vpop.f32.mrf.mxu0
        %v569 = vadd.f32 0.0, %v568
        %v570 = vpop.f32.mrf.mxu0
        %571 = vmatprep.mubr.bf16.mxu0 0
        %572 = vmatmul.mubr.bf16.gmra.mxu0 %v454
        %v573 = vpop.f32.mrf.mxu0
        %v574 = vadd.f32 0.0, %v573
        %v575 = vpop.f32.mrf.mxu0
        %v576 = vpop.f32.mrf.mxu0
        %v577 = vadd.f32 0.0, %v576
        %v578 = vpop.f32.mrf.mxu0
        %579 = vmatprep.mubr.bf16.mxu0 0
        %580 = vmatmul.mubr.bf16.gmra.mxu0 %v455
        %v581 = vpop.f32.mrf.mxu0
        %v582 = vadd.f32 0.0, %v581
        %v583 = vpop.f32.mrf.mxu0
        %v584 = vpop.f32.mrf.mxu0
        %v585 = vadd.f32 0.0, %v584
        %v586 = vpop.f32.mrf.mxu0
        %587 = vmatprep.mubr.bf16.mxu0 0
        %588 = vmatmul.mubr.bf16.gmra.mxu0 %v456
        %v589 = vpop.f32.mrf.mxu0
        %v590 = vadd.f32 0.0, %v589
        %v591 = vpop.f32.mrf.mxu0
        %v592 = vpop.f32.mrf.mxu0
        %v593 = vadd.f32 0.0, %v592
        %v594 = vpop.f32.mrf.mxu0
        %595 = vmatprep.mubr.bf16.mxu0 0
        %596 = vmatmul.mubr.bf16.gmra.mxu0 %v457
        %v597 = vpop.f32.mrf.mxu0
        %v598 = vadd.f32 0.0, %v597
        %v599 = vpop.f32.mrf.mxu0
        %v600 = vpop.f32.mrf.mxu0
        %v601 = vadd.f32 0.0, %v600
        %v602 = vpop.f32.mrf.mxu0
        %603 = vmatprep.mubr.bf16.mxu0 0
        %604 = vmatmul.mubr.bf16.gmra.mxu0 %v458
        %v605 = vpop.f32.mrf.mxu0
        %v606 = vadd.f32 0.0, %v605
        %v607 = vpop.f32.mrf.mxu0
        %v608 = vpop.f32.mrf.mxu0
        %v609 = vadd.f32 0.0, %v608
        %v610 = vpop.f32.mrf.mxu0
        %611 = vdwg.mxu0
        %v612 = vld [vmem:[#allocation2] sm:$0xff]
        %v613 = vld [vmem:[#allocation2 + $0x8] sm:$0xff]
        %v614 = vld [vmem:[#allocation2 + $0x10] sm:$0xff]
        %v615 = vld [vmem:[#allocation2 + $0x18] sm:$0xff]
        %v616 = vld [vmem:[#allocation2 + $0x20] sm:$0xff]
        %v617 = vld [vmem:[#allocation2 + $0x28] sm:$0xff]
        %v618 = vld [vmem:[#allocation2 + $0x30] sm:$0xff]
        %v619 = vld [vmem:[#allocation2 + $0x38] sm:$0xff]
        %v620 = vld [vmem:[#allocation2 + $0x40] sm:$0xff]
        %v621 = vld [vmem:[#allocation2 + $0x48] sm:$0xff]
        %v622 = vld [vmem:[#allocation2 + $0x50] sm:$0xff]
        %v623 = vld [vmem:[#allocation2 + $0x58] sm:$0xff]
        %v624 = vld [vmem:[#allocation2 + $0x60] sm:$0xff]
        %v625 = vld [vmem:[#allocation2 + $0x68] sm:$0xff]
        %v626 = vld [vmem:[#allocation2 + $0x70] sm:$0xff]
        %v627 = vld [vmem:[#allocation2 + $0x78] sm:$0xff]
        %628 = vmax.xlane.f32.xlu0 %v550
        %v629 = vpop.xlane.xlu0 %628
        %630 = vmax.xlane.f32.xlu0 %v553
        %v631 = vpop.xlane.xlu0 %630
        %632 = vmax.xlane.f32.xlu0 %v558
        %v633 = vpop.xlane.xlu0 %632
        %634 = vmax.xlane.f32.xlu0 %v561
        %v635 = vpop.xlane.xlu0 %634
        %636 = vmax.xlane.f32.xlu0 %v566
        %v637 = vpop.xlane.xlu0 %636
        %638 = vmax.xlane.f32.xlu0 %v569
        %v639 = vpop.xlane.xlu0 %638
        %640 = vmax.xlane.f32.xlu0 %v574
        %v641 = vpop.xlane.xlu0 %640
        %642 = vmax.xlane.f32.xlu0 %v577
        %v643 = vpop.xlane.xlu0 %642
        %644 = vmax.xlane.f32.xlu0 %v582
        %v645 = vpop.xlane.xlu0 %644
        %646 = vmax.xlane.f32.xlu0 %v585
        %v647 = vpop.xlane.xlu0 %646
        %648 = vmax.xlane.f32.xlu0 %v590
        %v649 = vpop.xlane.xlu0 %648
        %650 = vmax.xlane.f32.xlu0 %v593
        %v651 = vpop.xlane.xlu0 %650
        %652 = vmax.xlane.f32.xlu0 %v598
        %v653 = vpop.xlane.xlu0 %652
        %654 = vmax.xlane.f32.xlu0 %v601
        %v655 = vpop.xlane.xlu0 %654
        %656 = vmax.xlane.f32.xlu0 %v606
        %v657 = vpop.xlane.xlu0 %656
        %658 = vmax.xlane.f32.xlu0 %v609
        %v659 = vpop.xlane.xlu0 %658
        %v660 = vmax.f32 %v612, %v629
        %v661 = vmax.f32 %v613, %v631
        %v662 = vmax.f32 %v614, %v633
        %v663 = vmax.f32 %v615, %v635
        %v664 = vmax.f32 %v616, %v637
        %v665 = vmax.f32 %v617, %v639
        %v666 = vmax.f32 %v618, %v641
        %v667 = vmax.f32 %v619, %v643
        %v668 = vmax.f32 %v620, %v645
        %v669 = vmax.f32 %v621, %v647
        %v670 = vmax.f32 %v622, %v649
        %v671 = vmax.f32 %v623, %v651
        %v672 = vmax.f32 %v624, %v653
        %v673 = vmax.f32 %v625, %v655
        %v674 = vmax.f32 %v626, %v657
        %v675 = vmax.f32 %v627, %v659
        %v676 = vsub.f32 %v612, %v660
        %v677 = vsub.f32 %v613, %v661
        %v678 = vsub.f32 %v614, %v662
        %v679 = vsub.f32 %v615, %v663
        %v680 = vsub.f32 %v616, %v664
        %v681 = vsub.f32 %v617, %v665
        %v682 = vsub.f32 %v618, %v666
        %v683 = vsub.f32 %v619, %v667
        %v684 = vsub.f32 %v620, %v668
        %v685 = vsub.f32 %v621, %v669
        %v686 = vsub.f32 %v622, %v670
        %v687 = vsub.f32 %v623, %v671
        %v688 = vsub.f32 %v624, %v672
        %v689 = vsub.f32 %v625, %v673
        %v690 = vsub.f32 %v626, %v674
        %v691 = vsub.f32 %v627, %v675
        %v692 = vmul.f32 %v676, 1.442695
        %v693 = vpow.pop %v692
        %v694 = vmul.f32 %v677, 1.442695
        %v695 = vpow.pop %v694
        %v696 = vmul.f32 %v678, 1.442695
        %v697 = vpow.pop %v696
        %v698 = vmul.f32 %v679, 1.442695
        %v699 = vpow.pop %v698
        %v700 = vmul.f32 %v680, 1.442695
        %v701 = vpow.pop %v700
        %v702 = vmul.f32 %v681, 1.442695
        %v703 = vpow.pop %v702
        %v704 = vmul.f32 %v682, 1.442695
        %v705 = vpow.pop %v704
        %v706 = vmul.f32 %v683, 1.442695
        %v707 = vpow.pop %v706
        %v708 = vmul.f32 %v684, 1.442695
        %v709 = vpow.pop %v708
        %v710 = vmul.f32 %v685, 1.442695
        %v711 = vpow.pop %v710
        %v712 = vmul.f32 %v686, 1.442695
        %v713 = vpow.pop %v712
        %v714 = vmul.f32 %v687, 1.442695
        %v715 = vpow.pop %v714
        %v716 = vmul.f32 %v688, 1.442695
        %v717 = vpow.pop %v716
        %v718 = vmul.f32 %v689, 1.442695
        %v719 = vpow.pop %v718
        %v720 = vmul.f32 %v690, 1.442695
        %v721 = vpow.pop %v720
        %v722 = vmul.f32 %v691, 1.442695
        %v723 = vpow.pop %v722
        %725 = vset.pattern.permute.xlu0 0
        %726 = vperm.xlu0 %725, %v660
        %v727 = vpop.permute.xlu0 %726
        %730 = vset.pattern.permute.xlu0 0
        %731 = vperm.xlu0 %730, %v661
        %v732 = vpop.permute.xlu0 %731
        %735 = vset.pattern.permute.xlu0 0
        %736 = vperm.xlu0 %735, %v662
        %v737 = vpop.permute.xlu0 %736
        %740 = vset.pattern.permute.xlu0 0
        %741 = vperm.xlu0 %740, %v663
        %v742 = vpop.permute.xlu0 %741
        %745 = vset.pattern.permute.xlu0 0
        %746 = vperm.xlu0 %745, %v664
        %v747 = vpop.permute.xlu0 %746
        %750 = vset.pattern.permute.xlu0 0
        %751 = vperm.xlu0 %750, %v665
        %v752 = vpop.permute.xlu0 %751
        %755 = vset.pattern.permute.xlu0 0
        %756 = vperm.xlu0 %755, %v666
        %v757 = vpop.permute.xlu0 %756
        %760 = vset.pattern.permute.xlu0 0
        %761 = vperm.xlu0 %760, %v667
        %v762 = vpop.permute.xlu0 %761
        %765 = vset.pattern.permute.xlu0 0
        %766 = vperm.xlu0 %765, %v668
        %v767 = vpop.permute.xlu0 %766
        %770 = vset.pattern.permute.xlu0 0
        %771 = vperm.xlu0 %770, %v669
        %v772 = vpop.permute.xlu0 %771
        %775 = vset.pattern.permute.xlu0 0
        %776 = vperm.xlu0 %775, %v670
        %v777 = vpop.permute.xlu0 %776
        %780 = vset.pattern.permute.xlu0 0
        %781 = vperm.xlu0 %780, %v671
        %v782 = vpop.permute.xlu0 %781
        %785 = vset.pattern.permute.xlu0 0
        %786 = vperm.xlu0 %785, %v672
        %v787 = vpop.permute.xlu0 %786
        %790 = vset.pattern.permute.xlu0 0
        %791 = vperm.xlu0 %790, %v673
        %v792 = vpop.permute.xlu0 %791
        %795 = vset.pattern.permute.xlu0 0
        %796 = vperm.xlu0 %795, %v674
        %v797 = vpop.permute.xlu0 %796
        %800 = vset.pattern.permute.xlu0 0
        %801 = vperm.xlu0 %800, %v675
        %v802 = vpop.permute.xlu0 %801
        %v804 = vsub.f32 %v550, %v727
        %v805 = vsub.f32 %v553, %v732
        %v806 = vsub.f32 %v558, %v737
        %v807 = vsub.f32 %v561, %v742
        %v808 = vsub.f32 %v566, %v747
        %v809 = vsub.f32 %v569, %v752
        %v810 = vsub.f32 %v574, %v757
        %v811 = vsub.f32 %v577, %v762
        %v812 = vsub.f32 %v582, %v767
        %v813 = vsub.f32 %v585, %v772
        %v814 = vsub.f32 %v590, %v777
        %v815 = vsub.f32 %v593, %v782
        %v816 = vsub.f32 %v598, %v787
        %v817 = vsub.f32 %v601, %v792
        %v818 = vsub.f32 %v606, %v797
        %v819 = vsub.f32 %v609, %v802
        %v820 = vmul.f32 %v804, 1.442695
        %v821 = vpow.pop %v820
        %v822 = vmul.f32 %v805, 1.442695
        %v823 = vpow.pop %v822
        %v824 = vmul.f32 %v806, 1.442695
        %v825 = vpow.pop %v824
        %v826 = vmul.f32 %v807, 1.442695
        %v827 = vpow.pop %v826
        %v828 = vmul.f32 %v808, 1.442695
        %v829 = vpow.pop %v828
        %v830 = vmul.f32 %v809, 1.442695
        %v831 = vpow.pop %v830
        %v832 = vmul.f32 %v810, 1.442695
        %v833 = vpow.pop %v832
        %v834 = vmul.f32 %v811, 1.442695
        %v835 = vpow.pop %v834
        %v836 = vmul.f32 %v812, 1.442695
        %v837 = vpow.pop %v836
        %v838 = vmul.f32 %v813, 1.442695
        %v839 = vpow.pop %v838
        %v840 = vmul.f32 %v814, 1.442695
        %v841 = vpow.pop %v840
        %v842 = vmul.f32 %v815, 1.442695
        %v843 = vpow.pop %v842
        %v844 = vmul.f32 %v816, 1.442695
        %v845 = vpow.pop %v844
        %v846 = vmul.f32 %v817, 1.442695
        %v847 = vpow.pop %v846
        %v848 = vmul.f32 %v818, 1.442695
        %v849 = vpow.pop %v848
        %v850 = vmul.f32 %v819, 1.442695
        %v851 = vpow.pop %v850
        %v852 = vld [vmem:[#allocation3] sm:$0xff]
        %v853 = vld [vmem:[#allocation3 + $0x8] sm:$0xff]
        %v854 = vld [vmem:[#allocation3 + $0x10] sm:$0xff]
        %v855 = vld [vmem:[#allocation3 + $0x18] sm:$0xff]
        %v856 = vld [vmem:[#allocation3 + $0x20] sm:$0xff]
        %v857 = vld [vmem:[#allocation3 + $0x28] sm:$0xff]
        %v858 = vld [vmem:[#allocation3 + $0x30] sm:$0xff]
        %v859 = vld [vmem:[#allocation3 + $0x38] sm:$0xff]
        %v860 = vld [vmem:[#allocation3 + $0x40] sm:$0xff]
        %v861 = vld [vmem:[#allocation3 + $0x48] sm:$0xff]
        %v862 = vld [vmem:[#allocation3 + $0x50] sm:$0xff]
        %v863 = vld [vmem:[#allocation3 + $0x58] sm:$0xff]
        %v864 = vld [vmem:[#allocation3 + $0x60] sm:$0xff]
        %v865 = vld [vmem:[#allocation3 + $0x68] sm:$0xff]
        %v866 = vld [vmem:[#allocation3 + $0x70] sm:$0xff]
        %v867 = vld [vmem:[#allocation3 + $0x78] sm:$0xff]
        %v868 = vmul.f32 %v693, %v852
        %v869 = vmul.f32 %v695, %v853
        %v870 = vmul.f32 %v697, %v854
        %v871 = vmul.f32 %v699, %v855
        %v872 = vmul.f32 %v701, %v856
        %v873 = vmul.f32 %v703, %v857
        %v874 = vmul.f32 %v705, %v858
        %v875 = vmul.f32 %v707, %v859
        %v876 = vmul.f32 %v709, %v860
        %v877 = vmul.f32 %v711, %v861
        %v878 = vmul.f32 %v713, %v862
        %v879 = vmul.f32 %v715, %v863
        %v880 = vmul.f32 %v717, %v864
        %v881 = vmul.f32 %v719, %v865
        %v882 = vmul.f32 %v721, %v866
        %v883 = vmul.f32 %v723, %v867
        %884 = vadd.xlane.f32.xlu0 %v821
        %v885 = vpop.xlane.xlu0 %884
        %886 = vadd.xlane.f32.xlu0 %v823
        %v887 = vpop.xlane.xlu0 %886
        %888 = vadd.xlane.f32.xlu0 %v825
        %v889 = vpop.xlane.xlu0 %888
        %890 = vadd.xlane.f32.xlu0 %v827
        %v891 = vpop.xlane.xlu0 %890
        %892 = vadd.xlane.f32.xlu0 %v829
        %v893 = vpop.xlane.xlu0 %892
        %894 = vadd.xlane.f32.xlu0 %v831
        %v895 = vpop.xlane.xlu0 %894
        %896 = vadd.xlane.f32.xlu0 %v833
        %v897 = vpop.xlane.xlu0 %896
        %898 = vadd.xlane.f32.xlu0 %v835
        %v899 = vpop.xlane.xlu0 %898
        %900 = vadd.xlane.f32.xlu0 %v837
        %v901 = vpop.xlane.xlu0 %900
        %902 = vadd.xlane.f32.xlu0 %v839
        %v903 = vpop.xlane.xlu0 %902
        %904 = vadd.xlane.f32.xlu0 %v841
        %v905 = vpop.xlane.xlu0 %904
        %906 = vadd.xlane.f32.xlu0 %v843
        %v907 = vpop.xlane.xlu0 %906
        %908 = vadd.xlane.f32.xlu0 %v845
        %v909 = vpop.xlane.xlu0 %908
        %910 = vadd.xlane.f32.xlu0 %v847
        %v911 = vpop.xlane.xlu0 %910
        %912 = vadd.xlane.f32.xlu0 %v849
        %v913 = vpop.xlane.xlu0 %912
        %914 = vadd.xlane.f32.xlu0 %v851
        %v915 = vpop.xlane.xlu0 %914
        %v916 = vadd.f32 %v868, %v885
        %v917 = vadd.f32 %v869, %v887
        %v918 = vadd.f32 %v870, %v889
        %v919 = vadd.f32 %v871, %v891
        %v920 = vadd.f32 %v872, %v893
        %v921 = vadd.f32 %v873, %v895
        %v922 = vadd.f32 %v874, %v897
        %v923 = vadd.f32 %v875, %v899
        %v924 = vadd.f32 %v876, %v901
        %v925 = vadd.f32 %v877, %v903
        %v926 = vadd.f32 %v878, %v905
        %v927 = vadd.f32 %v879, %v907
        %v928 = vadd.f32 %v880, %v909
        %v929 = vadd.f32 %v881, %v911
        %v930 = vadd.f32 %v882, %v913
        %v931 = vadd.f32 %v883, %v915
        %vm932 = vcmask 7168
        %933 = vst.msk [vmem:[#allocation3] sm:$0xff] %vm932, %v916
        %934 = vst.msk [vmem:[#allocation3 + $0x8] sm:$0xff] %vm932, %v917
        %935 = vst.msk [vmem:[#allocation3 + $0x10] sm:$0xff] %vm932, %v918
        %936 = vst.msk [vmem:[#allocation3 + $0x18] sm:$0xff] %vm932, %v919
        %937 = vst.msk [vmem:[#allocation3 + $0x20] sm:$0xff] %vm932, %v920
        %938 = vst.msk [vmem:[#allocation3 + $0x28] sm:$0xff] %vm932, %v921
        %939 = vst.msk [vmem:[#allocation3 + $0x30] sm:$0xff] %vm932, %v922
        %940 = vst.msk [vmem:[#allocation3 + $0x38] sm:$0xff] %vm932, %v923
        %941 = vst.msk [vmem:[#allocation3 + $0x40] sm:$0xff] %vm932, %v924
        %942 = vst.msk [vmem:[#allocation3 + $0x48] sm:$0xff] %vm932, %v925
        %943 = vst.msk [vmem:[#allocation3 + $0x50] sm:$0xff] %vm932, %v926
        %944 = vst.msk [vmem:[#allocation3 + $0x58] sm:$0xff] %vm932, %v927
        %945 = vst.msk [vmem:[#allocation3 + $0x60] sm:$0xff] %vm932, %v928
        %946 = vst.msk [vmem:[#allocation3 + $0x68] sm:$0xff] %vm932, %v929
        %947 = vst.msk [vmem:[#allocation3 + $0x70] sm:$0xff] %vm932, %v930
        %948 = vst.msk [vmem:[#allocation3 + $0x78] sm:$0xff] %vm932, %v931
        %v949 = vld [vmem:[#allocation4] sm:$0xff]
        %v950 = vld [vmem:[#allocation4 + $0x8] sm:$0xff]
        %v951 = vld [vmem:[#allocation4 + $0x10] sm:$0xff]
        %v952 = vld [vmem:[#allocation4 + $0x18] sm:$0xff]
        %v953 = vld [vmem:[#allocation4 + $0x20] sm:$0xff]
        %v954 = vld [vmem:[#allocation4 + $0x28] sm:$0xff]
        %v955 = vld [vmem:[#allocation4 + $0x30] sm:$0xff]
        %v956 = vld [vmem:[#allocation4 + $0x38] sm:$0xff]
        %v957 = vld [vmem:[#allocation4 + $0x40] sm:$0xff]
        %v958 = vld [vmem:[#allocation4 + $0x48] sm:$0xff]
        %v959 = vld [vmem:[#allocation4 + $0x50] sm:$0xff]
        %v960 = vld [vmem:[#allocation4 + $0x58] sm:$0xff]
        %v961 = vld [vmem:[#allocation4 + $0x60] sm:$0xff]
        %v962 = vld [vmem:[#allocation4 + $0x68] sm:$0xff]
        %v963 = vld [vmem:[#allocation4 + $0x70] sm:$0xff]
        %v964 = vld [vmem:[#allocation4 + $0x78] sm:$0xff]
        %966 = vset.pattern.permute.xlu0 0
        %967 = vperm.xlu0 %966, %v693
        %v968 = vpop.permute.xlu0 %967
        %971 = vset.pattern.permute.xlu0 0
        %972 = vperm.xlu0 %971, %v695
        %v973 = vpop.permute.xlu0 %972
        %976 = vset.pattern.permute.xlu0 0
        %977 = vperm.xlu0 %976, %v697
        %v978 = vpop.permute.xlu0 %977
        %981 = vset.pattern.permute.xlu0 0
        %982 = vperm.xlu0 %981, %v699
        %v983 = vpop.permute.xlu0 %982
        %986 = vset.pattern.permute.xlu0 0
        %987 = vperm.xlu0 %986, %v701
        %v988 = vpop.permute.xlu0 %987
        %991 = vset.pattern.permute.xlu0 0
        %992 = vperm.xlu0 %991, %v703
        %v993 = vpop.permute.xlu0 %992
        %996 = vset.pattern.permute.xlu0 0
        %997 = vperm.xlu0 %996, %v705
        %v998 = vpop.permute.xlu0 %997
        %1001 = vset.pattern.permute.xlu0 0
        %1002 = vperm.xlu0 %1001, %v707
        %v1003 = vpop.permute.xlu0 %1002
        %1006 = vset.pattern.permute.xlu0 0
        %1007 = vperm.xlu0 %1006, %v709
        %v1008 = vpop.permute.xlu0 %1007
        %1011 = vset.pattern.permute.xlu0 0
        %1012 = vperm.xlu0 %1011, %v711
        %v1013 = vpop.permute.xlu0 %1012
        %1016 = vset.pattern.permute.xlu0 0
        %1017 = vperm.xlu0 %1016, %v713
        %v1018 = vpop.permute.xlu0 %1017
        %1021 = vset.pattern.permute.xlu0 0
        %1022 = vperm.xlu0 %1021, %v715
        %v1023 = vpop.permute.xlu0 %1022
        %1026 = vset.pattern.permute.xlu0 0
        %1027 = vperm.xlu0 %1026, %v717
        %v1028 = vpop.permute.xlu0 %1027
        %1031 = vset.pattern.permute.xlu0 0
        %1032 = vperm.xlu0 %1031, %v719
        %v1033 = vpop.permute.xlu0 %1032
        %1036 = vset.pattern.permute.xlu0 0
        %1037 = vperm.xlu0 %1036, %v721
        %v1038 = vpop.permute.xlu0 %1037
        %1041 = vset.pattern.permute.xlu0 0
        %1042 = vperm.xlu0 %1041, %v723
        %v1043 = vpop.permute.xlu0 %1042
        %v1045 = vmul.f32 %v968, %v949
        %v1046 = vmul.f32 %v973, %v950
        %v1047 = vmul.f32 %v978, %v951
        %v1048 = vmul.f32 %v983, %v952
        %v1049 = vmul.f32 %v988, %v953
        %v1050 = vmul.f32 %v993, %v954
        %v1051 = vmul.f32 %v998, %v955
        %v1052 = vmul.f32 %v1003, %v956
        %v1053 = vmul.f32 %v1008, %v957
        %v1054 = vmul.f32 %v1013, %v958
        %v1055 = vmul.f32 %v1018, %v959
        %v1056 = vmul.f32 %v1023, %v960
        %v1057 = vmul.f32 %v1028, %v961
        %v1058 = vmul.f32 %v1033, %v962
        %v1059 = vmul.f32 %v1038, %v963
        %v1060 = vmul.f32 %v1043, %v964
        %v1061 = vpack.c.bf16 %v823, %v821
        %v1062 = vpack.c.bf16 %v827, %v825
        %v1063 = vpack.c.bf16 %v831, %v829
        %v1064 = vpack.c.bf16 %v835, %v833
        %v1065 = vpack.c.bf16 %v839, %v837
        %v1066 = vpack.c.bf16 %v843, %v841
        %v1067 = vpack.c.bf16 %v847, %v845
        %v1068 = vpack.c.bf16 %v851, %v849
        %v1069 = vld [vmem:[%s330] sm:$0xf]
        %v1070 = vld [vmem:[%s330 + $0x4] sm:$0xf]
        %v1071 = vld [vmem:[%s330 + $0x8] sm:$0xf]
        %v1072 = vld [vmem:[%s330 + $0xc] sm:$0xf]
        %v1073 = vld [vmem:[%s330 + $0x10] sm:$0xf]
        %v1074 = vld [vmem:[%s330 + $0x14] sm:$0xf]
        %v1075 = vld [vmem:[%s330 + $0x18] sm:$0xf]
        %v1076 = vld [vmem:[%s330 + $0x1c] sm:$0xf]
        %v1077 = vld [vmem:[%s330 + $0x20] sm:$0xf]
        %v1078 = vld [vmem:[%s330 + $0x24] sm:$0xf]
        %v1079 = vld [vmem:[%s330 + $0x28] sm:$0xf]
        %v1080 = vld [vmem:[%s330 + $0x2c] sm:$0xf]
        %v1081 = vld [vmem:[%s330 + $0x30] sm:$0xf]
        %v1082 = vld [vmem:[%s330 + $0x34] sm:$0xf]
        %v1083 = vld [vmem:[%s330 + $0x38] sm:$0xf]
        %v1084 = vld [vmem:[%s330 + $0x3c] sm:$0xf]
        %v1101 = vunpack.c.l.b16 %v1069
        %v1102 = vunpack.c.l.b16 %v1070
        %v1103 = vunpack.c.l.b16 %v1071
        %v1104 = vunpack.c.l.b16 %v1072
        %v1105 = vunpack.c.l.b16 %v1073
        %v1106 = vunpack.c.l.b16 %v1074
        %v1107 = vunpack.c.l.b16 %v1075
        %v1108 = vunpack.c.l.b16 %v1076
        %v1109 = vunpack.c.l.b16 %v1077
        %v1110 = vunpack.c.l.b16 %v1078
        %v1111 = vunpack.c.l.b16 %v1079
        %v1112 = vunpack.c.l.b16 %v1080
        %v1113 = vunpack.c.l.b16 %v1081
        %v1114 = vunpack.c.l.b16 %v1082
        %v1115 = vunpack.c.l.b16 %v1083
        %v1116 = vunpack.c.l.b16 %v1084
        %v1117 = vpack.c.b16 %v1102, %v1101
        %v1118 = vpack.c.b16 %v1104, %v1103
        %v1119 = vpack.c.b16 %v1106, %v1105
        %v1120 = vpack.c.b16 %v1108, %v1107
        %v1121 = vpack.c.b16 %v1110, %v1109
        %v1122 = vpack.c.b16 %v1112, %v1111
        %v1123 = vpack.c.b16 %v1114, %v1113
        %v1124 = vpack.c.b16 %v1116, %v1115
        %1133 = vmatprep.subr.bf16.mxu0 0
        %1134 = vmatpush1.bf16.msra.mxu0 %v1124
        %1135 = vmatprep.subr.bf16.mxu0 0
        %1136 = vmatpush1.bf16.msra.mxu0 %v1123
        %1137 = vmatprep.subr.bf16.mxu0 0
        %1138 = vmatpush1.bf16.msra.mxu0 %v1122
        %1139 = vmatprep.subr.bf16.mxu0 0
        %1140 = vmatpush1.bf16.msra.mxu0 %v1121
        %1141 = vmatprep.subr.bf16.mxu0 0
        %1142 = vmatpush1.bf16.msra.mxu0 %v1120
        %1143 = vmatprep.subr.bf16.mxu0 0
        %1144 = vmatpush1.bf16.msra.mxu0 %v1119
        %1145 = vmatprep.subr.bf16.mxu0 0
        %1146 = vmatpush1.bf16.msra.mxu0 %v1118
        %1147 = vmatprep.subr.bf16.mxu0 0
        %1148 = vmatpush1.bf16.msra.mxu0 %v1117
        %1149 = vmatprep.subr.bf16.mxu0 0
        %1150 = vmatpush2.bf16.msra.mxu0 0
        %1151 = vmatprep.subr.bf16.mxu0 0
        %1152 = vmatpush2.bf16.msra.mxu0 0
        %1153 = vmatprep.subr.bf16.mxu0 0
        %1154 = vmatpush2.bf16.msra.mxu0 0
        %1155 = vmatprep.subr.bf16.mxu0 0
        %1156 = vmatpush2.bf16.msra.mxu0 0
        %1157 = vmatprep.subr.bf16.mxu0 0
        %1158 = vmatpush2.bf16.msra.mxu0 0
        %1159 = vmatprep.subr.bf16.mxu0 0
        %1160 = vmatpush2.bf16.msra.mxu0 0
        %1161 = vmatprep.subr.bf16.mxu0 0
        %1162 = vmatpush2.bf16.msra.mxu0 0
        %1163 = vmatprep.subr.bf16.mxu0 0
        %1164 = vmatpush2.bf16.msra.mxu0 0
        %1165 = vmatprep.mubr.bf16.mxu0 0
        %1166 = vmatmul.mubr.bf16.gmra.mxu0 %v1061
        %v1167 = vpop.f32.mrf.mxu0
        %v1168 = vadd.f32 0.0, %v1167
        %v1169 = vpop.f32.mrf.mxu0
        %v1170 = vpop.f32.mrf.mxu0
        %v1171 = vadd.f32 0.0, %v1170
        %v1172 = vpop.f32.mrf.mxu0
        %1173 = vmatprep.mubr.bf16.mxu0 0
        %1174 = vmatmul.mubr.bf16.gmra.mxu0 %v1062
        %v1175 = vpop.f32.mrf.mxu0
        %v1176 = vadd.f32 0.0, %v1175
        %v1177 = vpop.f32.mrf.mxu0
        %v1178 = vpop.f32.mrf.mxu0
        %v1179 = vadd.f32 0.0, %v1178
        %v1180 = vpop.f32.mrf.mxu0
        %1181 = vmatprep.mubr.bf16.mxu0 0
        %1182 = vmatmul.mubr.bf16.gmra.mxu0 %v1063
        %v1183 = vpop.f32.mrf.mxu0
        %v1184 = vadd.f32 0.0, %v1183
        %v1185 = vpop.f32.mrf.mxu0
        %v1186 = vpop.f32.mrf.mxu0
        %v1187 = vadd.f32 0.0, %v1186
        %v1188 = vpop.f32.mrf.mxu0
        %1189 = vmatprep.mubr.bf16.mxu0 0
        %1190 = vmatmul.mubr.bf16.gmra.mxu0 %v1064
        %v1191 = vpop.f32.mrf.mxu0
        %v1192 = vadd.f32 0.0, %v1191
        %v1193 = vpop.f32.mrf.mxu0
        %v1194 = vpop.f32.mrf.mxu0
        %v1195 = vadd.f32 0.0, %v1194
        %v1196 = vpop.f32.mrf.mxu0
        %1197 = vmatprep.mubr.bf16.mxu0 0
        %1198 = vmatmul.mubr.bf16.gmra.mxu0 %v1065
        %v1199 = vpop.f32.mrf.mxu0
        %v1200 = vadd.f32 0.0, %v1199
        %v1201 = vpop.f32.mrf.mxu0
        %v1202 = vpop.f32.mrf.mxu0
        %v1203 = vadd.f32 0.0, %v1202
        %v1204 = vpop.f32.mrf.mxu0
        %1205 = vmatprep.mubr.bf16.mxu0 0
        %1206 = vmatmul.mubr.bf16.gmra.mxu0 %v1066
        %v1207 = vpop.f32.mrf.mxu0
        %v1208 = vadd.f32 0.0, %v1207
        %v1209 = vpop.f32.mrf.mxu0
        %v1210 = vpop.f32.mrf.mxu0
        %v1211 = vadd.f32 0.0, %v1210
        %v1212 = vpop.f32.mrf.mxu0
        %1213 = vmatprep.mubr.bf16.mxu0 0
        %1214 = vmatmul.mubr.bf16.gmra.mxu0 %v1067
        %v1215 = vpop.f32.mrf.mxu0
        %v1216 = vadd.f32 0.0, %v1215
        %v1217 = vpop.f32.mrf.mxu0
        %v1218 = vpop.f32.mrf.mxu0
        %v1219 = vadd.f32 0.0, %v1218
        %v1220 = vpop.f32.mrf.mxu0
        %1221 = vmatprep.mubr.bf16.mxu0 0
        %1222 = vmatmul.mubr.bf16.gmra.mxu0 %v1068
        %v1223 = vpop.f32.mrf.mxu0
        %v1224 = vadd.f32 0.0, %v1223
        %v1225 = vpop.f32.mrf.mxu0
        %v1226 = vpop.f32.mrf.mxu0
        %v1227 = vadd.f32 0.0, %v1226
        %v1228 = vpop.f32.mrf.mxu0
        %1229 = vdwg.mxu0
        %v1230 = vadd.f32 %v1045, %v1168
        %v1231 = vadd.f32 %v1046, %v1171
        %v1232 = vadd.f32 %v1047, %v1176
        %v1233 = vadd.f32 %v1048, %v1179
        %v1234 = vadd.f32 %v1049, %v1184
        %v1235 = vadd.f32 %v1050, %v1187
        %v1236 = vadd.f32 %v1051, %v1192
        %v1237 = vadd.f32 %v1052, %v1195
        %v1238 = vadd.f32 %v1053, %v1200
        %v1239 = vadd.f32 %v1054, %v1203
        %v1240 = vadd.f32 %v1055, %v1208
        %v1241 = vadd.f32 %v1056, %v1211
        %v1242 = vadd.f32 %v1057, %v1216
        %v1243 = vadd.f32 %v1058, %v1219
        %v1244 = vadd.f32 %v1059, %v1224
        %v1245 = vadd.f32 %v1060, %v1227
        %1246 = vst [vmem:[#allocation4] sm:$0xff] %v1230
        %1247 = vst [vmem:[#allocation4 + $0x8] sm:$0xff] %v1231
        %1248 = vst [vmem:[#allocation4 + $0x10] sm:$0xff] %v1232
        %1249 = vst [vmem:[#allocation4 + $0x18] sm:$0xff] %v1233
        %1250 = vst [vmem:[#allocation4 + $0x20] sm:$0xff] %v1234
        %1251 = vst [vmem:[#allocation4 + $0x28] sm:$0xff] %v1235
        %1252 = vst [vmem:[#allocation4 + $0x30] sm:$0xff] %v1236
        %1253 = vst [vmem:[#allocation4 + $0x38] sm:$0xff] %v1237
        %1254 = vst [vmem:[#allocation4 + $0x40] sm:$0xff] %v1238
        %1255 = vst [vmem:[#allocation4 + $0x48] sm:$0xff] %v1239
        %1256 = vst [vmem:[#allocation4 + $0x50] sm:$0xff] %v1240
        %1257 = vst [vmem:[#allocation4 + $0x58] sm:$0xff] %v1241
        %1258 = vst [vmem:[#allocation4 + $0x60] sm:$0xff] %v1242
        %1259 = vst [vmem:[#allocation4 + $0x68] sm:$0xff] %v1243
        %1260 = vst [vmem:[#allocation4 + $0x70] sm:$0xff] %v1244
        %1261 = vst [vmem:[#allocation4 + $0x78] sm:$0xff] %v1245
        %1262 = vst.msk [vmem:[#allocation2] sm:$0xff] %vm932, %v660
        %1263 = vst.msk [vmem:[#allocation2 + $0x8] sm:$0xff] %vm932, %v661
        %1264 = vst.msk [vmem:[#allocation2 + $0x10] sm:$0xff] %vm932, %v662
        %1265 = vst.msk [vmem:[#allocation2 + $0x18] sm:$0xff] %vm932, %v663
        %1266 = vst.msk [vmem:[#allocation2 + $0x20] sm:$0xff] %vm932, %v664
        %1267 = vst.msk [vmem:[#allocation2 + $0x28] sm:$0xff] %vm932, %v665
        %1268 = vst.msk [vmem:[#allocation2 + $0x30] sm:$0xff] %vm932, %v666
        %1269 = vst.msk [vmem:[#allocation2 + $0x38] sm:$0xff] %vm932, %v667
        %1270 = vst.msk [vmem:[#allocation2 + $0x40] sm:$0xff] %vm932, %v668
        %1271 = vst.msk [vmem:[#allocation2 + $0x48] sm:$0xff] %vm932, %v669
        %1272 = vst.msk [vmem:[#allocation2 + $0x50] sm:$0xff] %vm932, %v670
        %1273 = vst.msk [vmem:[#allocation2 + $0x58] sm:$0xff] %vm932, %v671
        %1274 = vst.msk [vmem:[#allocation2 + $0x60] sm:$0xff] %vm932, %v672
        %1275 = vst.msk [vmem:[#allocation2 + $0x68] sm:$0xff] %vm932, %v673
        %1276 = vst.msk [vmem:[#allocation2 + $0x70] sm:$0xff] %vm932, %v674
        %1277 = vst.msk [vmem:[#allocation2 + $0x78] sm:$0xff] %vm932, %v675
        %p1278 = scmp.eq.s32.totalorder %s26, 1
        // Predicated region
        $region45: #{baseoc_context_forward.3} parent=39 // pred_check
          %p1279 = pneg %p1278
        $region46: #{baseoc_context_forward.3} parent=39 // pred_check_branch
          %1281 = sbr.rel (%p1279) target = $region48
        $region47: #{baseoc_context_forward.3} parent=39 // pred_region
          %v1282 = vld [vmem:[#allocation4] sm:$0xff]
          %v1283 = vld [vmem:[#allocation4 + $0x8] sm:$0xff]
          %v1284 = vld [vmem:[#allocation4 + $0x10] sm:$0xff]
          %v1285 = vld [vmem:[#allocation4 + $0x18] sm:$0xff]
          %v1286 = vld [vmem:[#allocation4 + $0x20] sm:$0xff]
          %v1287 = vld [vmem:[#allocation4 + $0x28] sm:$0xff]
          %v1288 = vld [vmem:[#allocation4 + $0x30] sm:$0xff]
          %v1289 = vld [vmem:[#allocation4 + $0x38] sm:$0xff]
          %v1290 = vld [vmem:[#allocation4 + $0x40] sm:$0xff]
          %v1291 = vld [vmem:[#allocation4 + $0x48] sm:$0xff]
          %v1292 = vld [vmem:[#allocation4 + $0x50] sm:$0xff]
          %v1293 = vld [vmem:[#allocation4 + $0x58] sm:$0xff]
          %v1294 = vld [vmem:[#allocation4 + $0x60] sm:$0xff]
          %v1295 = vld [vmem:[#allocation4 + $0x68] sm:$0xff]
          %v1296 = vld [vmem:[#allocation4 + $0x70] sm:$0xff]
          %v1297 = vld [vmem:[#allocation4 + $0x78] sm:$0xff]
          %v1298 = vld [vmem:[#allocation3] sm:$0xff]
          %v1299 = vld [vmem:[#allocation3 + $0x8] sm:$0xff]
          %v1300 = vld [vmem:[#allocation3 + $0x10] sm:$0xff]
          %v1301 = vld [vmem:[#allocation3 + $0x18] sm:$0xff]
          %v1302 = vld [vmem:[#allocation3 + $0x20] sm:$0xff]
          %v1303 = vld [vmem:[#allocation3 + $0x28] sm:$0xff]
          %v1304 = vld [vmem:[#allocation3 + $0x30] sm:$0xff]
          %v1305 = vld [vmem:[#allocation3 + $0x38] sm:$0xff]
          %v1306 = vld [vmem:[#allocation3 + $0x40] sm:$0xff]
          %v1307 = vld [vmem:[#allocation3 + $0x48] sm:$0xff]
          %v1308 = vld [vmem:[#allocation3 + $0x50] sm:$0xff]
          %v1309 = vld [vmem:[#allocation3 + $0x58] sm:$0xff]
          %v1310 = vld [vmem:[#allocation3 + $0x60] sm:$0xff]
          %v1311 = vld [vmem:[#allocation3 + $0x68] sm:$0xff]
          %v1312 = vld [vmem:[#allocation3 + $0x70] sm:$0xff]
          %v1313 = vld [vmem:[#allocation3 + $0x78] sm:$0xff]
          %v1314 = vrcp.pop %v1298
          %v1315 = vrcp.pop %v1299
          %v1316 = vrcp.pop %v1300
          %v1317 = vrcp.pop %v1301
          %v1318 = vrcp.pop %v1302
          %v1319 = vrcp.pop %v1303
          %v1320 = vrcp.pop %v1304
          %v1321 = vrcp.pop %v1305
          %v1322 = vrcp.pop %v1306
          %v1323 = vrcp.pop %v1307
          %v1324 = vrcp.pop %v1308
          %v1325 = vrcp.pop %v1309
          %v1326 = vrcp.pop %v1310
          %v1327 = vrcp.pop %v1311
          %v1328 = vrcp.pop %v1312
          %v1329 = vrcp.pop %v1313
          %1331 = vset.pattern.permute.xlu0 0
          %1332 = vperm.xlu0 %1331, %v1314
          %v1333 = vpop.permute.xlu0 %1332
          %1336 = vset.pattern.permute.xlu0 0
          %1337 = vperm.xlu0 %1336, %v1315
          %v1338 = vpop.permute.xlu0 %1337
          %1341 = vset.pattern.permute.xlu0 0
          %1342 = vperm.xlu0 %1341, %v1316
          %v1343 = vpop.permute.xlu0 %1342
          %1346 = vset.pattern.permute.xlu0 0
          %1347 = vperm.xlu0 %1346, %v1317
          %v1348 = vpop.permute.xlu0 %1347
          %1351 = vset.pattern.permute.xlu0 0
          %1352 = vperm.xlu0 %1351, %v1318
          %v1353 = vpop.permute.xlu0 %1352
          %1356 = vset.pattern.permute.xlu0 0
          %1357 = vperm.xlu0 %1356, %v1319
          %v1358 = vpop.permute.xlu0 %1357
          %1361 = vset.pattern.permute.xlu0 0
          %1362 = vperm.xlu0 %1361, %v1320
          %v1363 = vpop.permute.xlu0 %1362
          %1366 = vset.pattern.permute.xlu0 0
          %1367 = vperm.xlu0 %1366, %v1321
          %v1368 = vpop.permute.xlu0 %1367
          %1371 = vset.pattern.permute.xlu0 0
          %1372 = vperm.xlu0 %1371, %v1322
          %v1373 = vpop.permute.xlu0 %1372
          %1376 = vset.pattern.permute.xlu0 0
          %1377 = vperm.xlu0 %1376, %v1323
          %v1378 = vpop.permute.xlu0 %1377
          %1381 = vset.pattern.permute.xlu0 0
          %1382 = vperm.xlu0 %1381, %v1324
          %v1383 = vpop.permute.xlu0 %1382
          %1386 = vset.pattern.permute.xlu0 0
          %1387 = vperm.xlu0 %1386, %v1325
          %v1388 = vpop.permute.xlu0 %1387
          %1391 = vset.pattern.permute.xlu0 0
          %1392 = vperm.xlu0 %1391, %v1326
          %v1393 = vpop.permute.xlu0 %1392
          %1396 = vset.pattern.permute.xlu0 0
          %1397 = vperm.xlu0 %1396, %v1327
          %v1398 = vpop.permute.xlu0 %1397
          %1401 = vset.pattern.permute.xlu0 0
          %1402 = vperm.xlu0 %1401, %v1328
          %v1403 = vpop.permute.xlu0 %1402
          %1406 = vset.pattern.permute.xlu0 0
          %1407 = vperm.xlu0 %1406, %v1329
          %v1408 = vpop.permute.xlu0 %1407
          %v1410 = vmul.f32 %v1282, %v1333
          %v1411 = vmul.f32 %v1283, %v1338
          %v1412 = vmul.f32 %v1284, %v1343
          %v1413 = vmul.f32 %v1285, %v1348
          %v1414 = vmul.f32 %v1286, %v1353
          %v1415 = vmul.f32 %v1287, %v1358
          %v1416 = vmul.f32 %v1288, %v1363
          %v1417 = vmul.f32 %v1289, %v1368
          %v1418 = vmul.f32 %v1290, %v1373
          %v1419 = vmul.f32 %v1291, %v1378
          %v1420 = vmul.f32 %v1292, %v1383
          %v1421 = vmul.f32 %v1293, %v1388
          %v1422 = vmul.f32 %v1294, %v1393
          %v1423 = vmul.f32 %v1295, %v1398
          %v1424 = vmul.f32 %v1296, %v1403
          %v1425 = vmul.f32 %v1297, %v1408
          %v1426 = vpack.c.bf16 %v1411, %v1410
          %v1427 = vpack.c.bf16 %v1413, %v1412
          %v1428 = vpack.c.bf16 %v1415, %v1414
          %v1429 = vpack.c.bf16 %v1417, %v1416
          %v1430 = vpack.c.bf16 %v1419, %v1418
          %v1431 = vpack.c.bf16 %v1421, %v1420
          %v1432 = vpack.c.bf16 %v1423, %v1422
          %v1433 = vpack.c.bf16 %v1425, %v1424
          %v1434 = vld [vmem:[%s3] sm:$0xf]
          %v1435 = vld [vmem:[%s3 + $0x4] sm:$0xf]
          %v1436 = vld [vmem:[%s3 + $0x8] sm:$0xf]
          %v1437 = vld [vmem:[%s3 + $0xc] sm:$0xf]
          %v1438 = vld [vmem:[%s3 + $0x10] sm:$0xf]
          %v1439 = vld [vmem:[%s3 + $0x14] sm:$0xf]
          %v1440 = vld [vmem:[%s3 + $0x18] sm:$0xf]
          %v1441 = vld [vmem:[%s3 + $0x1c] sm:$0xf]
          %v1442 = vld [vmem:[%s3 + $0x20] sm:$0xf]
          %v1443 = vld [vmem:[%s3 + $0x24] sm:$0xf]
          %v1444 = vld [vmem:[%s3 + $0x28] sm:$0xf]
          %v1445 = vld [vmem:[%s3 + $0x2c] sm:$0xf]
          %v1446 = vld [vmem:[%s3 + $0x30] sm:$0xf]
          %v1447 = vld [vmem:[%s3 + $0x34] sm:$0xf]
          %v1448 = vld [vmem:[%s3 + $0x38] sm:$0xf]
          %v1449 = vld [vmem:[%s3 + $0x3c] sm:$0xf]
          %v1450 = vld [vmem:[%s4] sm:$0x1]
          %v1452 = vlaneseq
          %v1453 = vshrl.u32 %v1452, 7
          %v1454 = vsub.s32 0, %v1453
          %v1455 = vrot.slane %v1450, %v1454
          %v1473 = vunpack.c.l.b16 %v1434
          %v1474 = vunpack.c.l.b16 %v1435
          %v1475 = vunpack.c.l.b16 %v1436
          %v1476 = vunpack.c.l.b16 %v1437
          %v1477 = vunpack.c.l.b16 %v1438
          %v1478 = vunpack.c.l.b16 %v1439
          %v1479 = vunpack.c.l.b16 %v1440
          %v1480 = vunpack.c.l.b16 %v1441
          %v1481 = vunpack.c.l.b16 %v1442
          %v1482 = vunpack.c.l.b16 %v1443
          %v1483 = vunpack.c.l.b16 %v1444
          %v1484 = vunpack.c.l.b16 %v1445
          %v1485 = vunpack.c.l.b16 %v1446
          %v1486 = vunpack.c.l.b16 %v1447
          %v1487 = vunpack.c.l.b16 %v1448
          %v1488 = vunpack.c.l.b16 %v1449
          %v1489 = vpack.c.b16 %v1474, %v1473
          %v1490 = vpack.c.b16 %v1476, %v1475
          %v1491 = vpack.c.b16 %v1478, %v1477
          %v1492 = vpack.c.b16 %v1480, %v1479
          %v1493 = vpack.c.b16 %v1482, %v1481
          %v1494 = vpack.c.b16 %v1484, %v1483
          %v1495 = vpack.c.b16 %v1486, %v1485
          %v1496 = vpack.c.b16 %v1488, %v1487
          %1505 = vmatprep.subr.bf16.mxu0 0
          %1506 = vmatpush1.bf16.msra.mxu0 %v1496
          %1507 = vmatprep.subr.bf16.mxu0 0
          %1508 = vmatpush1.bf16.msra.mxu0 %v1495
          %1509 = vmatprep.subr.bf16.mxu0 0
          %1510 = vmatpush1.bf16.msra.mxu0 %v1494
          %1511 = vmatprep.subr.bf16.mxu0 0
          %1512 = vmatpush1.bf16.msra.mxu0 %v1493
          %1513 = vmatprep.subr.bf16.mxu0 0
          %1514 = vmatpush1.bf16.msra.mxu0 %v1492
          %1515 = vmatprep.subr.bf16.mxu0 0
          %1516 = vmatpush1.bf16.msra.mxu0 %v1491
          %1517 = vmatprep.subr.bf16.mxu0 0
          %1518 = vmatpush1.bf16.msra.mxu0 %v1490
          %1519 = vmatprep.subr.bf16.mxu0 0
          %1520 = vmatpush1.bf16.msra.mxu0 %v1489
          %1521 = vmatprep.subr.bf16.mxu0 0
          %1522 = vmatpush2.bf16.msra.mxu0 0
          %1523 = vmatprep.subr.bf16.mxu0 0
          %1524 = vmatpush2.bf16.msra.mxu0 0
          %1525 = vmatprep.subr.bf16.mxu0 0
          %1526 = vmatpush2.bf16.msra.mxu0 0
          %1527 = vmatprep.subr.bf16.mxu0 0
          %1528 = vmatpush2.bf16.msra.mxu0 0
          %1529 = vmatprep.subr.bf16.mxu0 0
          %1530 = vmatpush2.bf16.msra.mxu0 0
          %1531 = vmatprep.subr.bf16.mxu0 0
          %1532 = vmatpush2.bf16.msra.mxu0 0
          %1533 = vmatprep.subr.bf16.mxu0 0
          %1534 = vmatpush2.bf16.msra.mxu0 0
          %1535 = vmatprep.subr.bf16.mxu0 0
          %1536 = vmatpush2.bf16.msra.mxu0 0
          %1537 = vmatprep.mubr.bf16.mxu0 0
          %1538 = vmatmul.mubr.bf16.gmra.mxu0 %v1426
          %v1539 = vpop.f32.mrf.mxu0
          %v1540 = vadd.f32 %v1455, %v1539
          %v1541 = vpop.f32.mrf.mxu0
          %v1542 = vpop.f32.mrf.mxu0
          %v1543 = vadd.f32 %v1455, %v1542
          %v1544 = vpop.f32.mrf.mxu0
          %1545 = vmatprep.mubr.bf16.mxu0 0
          %1546 = vmatmul.mubr.bf16.gmra.mxu0 %v1427
          %v1547 = vpop.f32.mrf.mxu0
          %v1548 = vadd.f32 %v1455, %v1547
          %v1549 = vpop.f32.mrf.mxu0
          %v1550 = vpop.f32.mrf.mxu0
          %v1551 = vadd.f32 %v1455, %v1550
          %v1552 = vpop.f32.mrf.mxu0
          %1553 = vmatprep.mubr.bf16.mxu0 0
          %1554 = vmatmul.mubr.bf16.gmra.mxu0 %v1428
          %v1555 = vpop.f32.mrf.mxu0
          %v1556 = vadd.f32 %v1455, %v1555
          %v1557 = vpop.f32.mrf.mxu0
          %v1558 = vpop.f32.mrf.mxu0
          %v1559 = vadd.f32 %v1455, %v1558
          %v1560 = vpop.f32.mrf.mxu0
          %1561 = vmatprep.mubr.bf16.mxu0 0
          %1562 = vmatmul.mubr.bf16.gmra.mxu0 %v1429
          %v1563 = vpop.f32.mrf.mxu0
          %v1564 = vadd.f32 %v1455, %v1563
          %v1565 = vpop.f32.mrf.mxu0
          %v1566 = vpop.f32.mrf.mxu0
          %v1567 = vadd.f32 %v1455, %v1566
          %v1568 = vpop.f32.mrf.mxu0
          %1569 = vmatprep.mubr.bf16.mxu0 0
          %1570 = vmatmul.mubr.bf16.gmra.mxu0 %v1430
          %v1571 = vpop.f32.mrf.mxu0
          %v1572 = vadd.f32 %v1455, %v1571
          %v1573 = vpop.f32.mrf.mxu0
          %v1574 = vpop.f32.mrf.mxu0
          %v1575 = vadd.f32 %v1455, %v1574
          %v1576 = vpop.f32.mrf.mxu0
          %1577 = vmatprep.mubr.bf16.mxu0 0
          %1578 = vmatmul.mubr.bf16.gmra.mxu0 %v1431
          %v1579 = vpop.f32.mrf.mxu0
          %v1580 = vadd.f32 %v1455, %v1579
          %v1581 = vpop.f32.mrf.mxu0
          %v1582 = vpop.f32.mrf.mxu0
          %v1583 = vadd.f32 %v1455, %v1582
          %v1584 = vpop.f32.mrf.mxu0
          %1585 = vmatprep.mubr.bf16.mxu0 0
          %1586 = vmatmul.mubr.bf16.gmra.mxu0 %v1432
          %v1587 = vpop.f32.mrf.mxu0
          %v1588 = vadd.f32 %v1455, %v1587
          %v1589 = vpop.f32.mrf.mxu0
          %v1590 = vpop.f32.mrf.mxu0
          %v1591 = vadd.f32 %v1455, %v1590
          %v1592 = vpop.f32.mrf.mxu0
          %1593 = vmatprep.mubr.bf16.mxu0 0
          %1594 = vmatmul.mubr.bf16.gmra.mxu0 %v1433
          %v1595 = vpop.f32.mrf.mxu0
          %v1596 = vadd.f32 %v1455, %v1595
          %v1597 = vpop.f32.mrf.mxu0
          %v1598 = vpop.f32.mrf.mxu0
          %v1599 = vadd.f32 %v1455, %v1598
          %v1600 = vpop.f32.mrf.mxu0
          %1601 = vdwg.mxu0
          %v1602 = vmax.f32 %v1540, 0.0
          %v1603 = vmax.f32 %v1543, 0.0
          %v1604 = vmax.f32 %v1548, 0.0
          %v1605 = vmax.f32 %v1551, 0.0
          %v1606 = vmax.f32 %v1556, 0.0
          %v1607 = vmax.f32 %v1559, 0.0
          %v1608 = vmax.f32 %v1564, 0.0
          %v1609 = vmax.f32 %v1567, 0.0
          %v1610 = vmax.f32 %v1572, 0.0
          %v1611 = vmax.f32 %v1575, 0.0
          %v1612 = vmax.f32 %v1580, 0.0
          %v1613 = vmax.f32 %v1583, 0.0
          %v1614 = vmax.f32 %v1588, 0.0
          %v1615 = vmax.f32 %v1591, 0.0
          %v1616 = vmax.f32 %v1596, 0.0
          %v1617 = vmax.f32 %v1599, 0.0
          %1618 = vst [vmem:[%s301] sm:$0xff] %v1602
          %1619 = vst [vmem:[%s301 + $0x8] sm:$0xff] %v1603
          %1620 = vst [vmem:[%s301 + $0x10] sm:$0xff] %v1604
          %1621 = vst [vmem:[%s301 + $0x18] sm:$0xff] %v1605
          %1622 = vst [vmem:[%s301 + $0x20] sm:$0xff] %v1606
          %1623 = vst [vmem:[%s301 + $0x28] sm:$0xff] %v1607
          %1624 = vst [vmem:[%s301 + $0x30] sm:$0xff] %v1608
          %1625 = vst [vmem:[%s301 + $0x38] sm:$0xff] %v1609
          %1626 = vst [vmem:[%s301 + $0x40] sm:$0xff] %v1610
          %1627 = vst [vmem:[%s301 + $0x48] sm:$0xff] %v1611
          %1628 = vst [vmem:[%s301 + $0x50] sm:$0xff] %v1612
          %1629 = vst [vmem:[%s301 + $0x58] sm:$0xff] %v1613
          %1630 = vst [vmem:[%s301 + $0x60] sm:$0xff] %v1614
          %1631 = vst [vmem:[%s301 + $0x68] sm:$0xff] %v1615
          %1632 = vst [vmem:[%s301 + $0x70] sm:$0xff] %v1616
          %1633 = vst [vmem:[%s301 + $0x78] sm:$0xff] %v1617
        $region48: #{baseoc_context_forward.3} parent=39 // pred_fallthru
          _
        %s1634 = sand.u32 %s174, 1
        %s1635 = scalar_lea.sflag [#allocation6], %s1634
        %s1636 = sand.u32 %s174, 1
        %s1637 = smul.addr %s1636, 128
        %s1638 = scalar_lea.vmem [#allocation5], %s1637
        // Predicated region
        $region49: #{baseoc_context_forward.3} parent=39 // pred_check
          %p1639 = pneg %p184
        $region50: #{baseoc_context_forward.3} parent=39 // pred_check_branch
          %1641 = sbr.rel (%p1639) target = $region52
        $region51: #{baseoc_context_forward.3} parent=39 // pred_region
          %s1642 = smul.u32 16, %s25
          %s1644 = ssub.s32 2048, 2048
          %1645 = vsyncadd %s1635, %s1644
          %s1646 = smul.addr %s24, 32
          %s1647 = sadd.s32 %s1642, %s1646
          %s1648 = smul.addr %s1647, 128
          %s1649 = scalar_lea.hbm %s5, %s1648
          %s1650 = sshll.u32 %s1638, 4
          %s1651 = int_to_ptr.vmem [resolvable:$true] %s1650
          %1656 = dma.vmem_to_hbm [thread:$0]  %s1651, 2048, %s1649, %s1635, 128, 128, 8
        $region52: #{baseoc_context_forward.3} parent=39 // pred_fallthru
          _
      $region40: #{baseoc_context_forward.3} parent=5 // pred_fallthru
        _
      %p1657 = scmp.le.s32.totalorder 2, %s14
      // Predicated region
      $region53: #{baseoc_context_forward.3} parent=5 // pred_check
        %p1658 = pneg %p1657
      $region54: #{baseoc_context_forward.3} parent=5 // pred_check_branch
        %1660 = sbr.rel (%p1658) target = $region56
      $region55: #{baseoc_context_forward.3} parent=5 // pred_region
        %s1661 = ssub.s32 %s14, 2
        // Predicated region
        $region57: #{baseoc_context_forward.3} parent=55 // pred_check
          %p1662 = pneg %p190
        $region58: #{baseoc_context_forward.3} parent=55 // pred_check_branch
          %1664 = sbr.rel (%p1662) target = $region60
        $region59: #{baseoc_context_forward.3} parent=55 // pred_region
          %s1665 = sand.u32 %s175, 1
          %s1666 = scalar_lea.sflag [#allocation6], %s1665
          %s1667 = sand.u32 %s175, 1
          %s1668 = smul.addr %s1667, 128
          %s1669 = scalar_lea.vmem [#allocation5], %s1668
          %1670 = dma.done %s1666, 2048
        $region60: #{baseoc_context_forward.3} parent=55 // pred_fallthru
          _
      $region56: #{baseoc_context_forward.3} parent=5 // pred_fallthru
        _
    $region6: #{baseoc_context_forward.3} parent=1 // loop_footer
      %s18 = sadd.s32 1, %s14
    $region7: #{baseoc_context_forward.3} parent=1 // loop_footer_branch
      %13 = sbr.rel target = $region3
    $region8: #{baseoc_context_forward.3} parent=1 // loop_exit
      _
    %1671 = vsyncpa [#allocation6], 1
    %s1672 = scalar_lea.sflag [#allocation6], 1
    %1673 = vsyncpa %s1672, 1

</llo_original>
